<compile_context>
chip_gen: v5e
topology: v5e:2x2
jax: 0.10.0
libtpu: 0.0.40
codegen_flags: <defaults>
</compile_context>

<pallas_src>
import functools

import jax
import jax.numpy as jnp
from jax import lax
from jax.experimental import pallas as pl
from jax.experimental.pallas import tpu as pltpu

LN_EPS = 1e-5                         # torch.nn.LayerNorm default
LANE = 128
TB_MAX = 2048                         # upper bound on batch-tile rows
VMEM_TILE_BUDGET = 20 * 1024 * 1024   # per-tile working set, safe under v7x scoped VMEM


def _round_up(x, m):
    return ((x + m - 1) // m) * m


def _bytes_per_row(i_pad, h_pad, o_pad):
    # double-buffered f32 input tile + double-buffered bf16 output tile
    # + rough f32 activation scratch inside the kernel body.
    return 2 * i_pad * 4 + 2 * o_pad * 2 + 6 * h_pad * 4


# ---------------------------------------------------------------------------
# Pallas kernel: whole forward hot path for one batch tile (all f32 math).
# ---------------------------------------------------------------------------
def _resnet_kernel(inp_ref,                  # [TB, i_pad]              f32
                   w_in_ref, b_in_ref,       # [i_pad, 2*h_pad], [1, 2*h_pad]  (proj | l1 fused)
                   g1_ref, be1_ref,          # ln1  [1, h_pad]
                   w2_ref, b2_ref,           # [h_pad, h_pad], [1, h_pad]
                   g2_ref, be2_ref,          # ln2  [1, h_pad]
                   wo_ref, bo_ref,           # [h_pad, o_pad], [1, o_pad]
                   out_ref,                  # [TB, o_pad]              bf16
                   *, h_size, h_pad):
    inv_h = 1.0 / float(h_size)

    # Fused input-side GEMM (shared LHS for proj and l1).
    fused = jnp.dot(inp_ref[...], w_in_ref[...],
                    preferred_element_type=jnp.float32) + b_in_ref[...]
    # h_pad is a multiple of 128, so both slices fall on lane-tile boundaries.
    x_proj = fused[:, :h_pad]
    h = fused[:, h_pad:]

    # LayerNorm over the TRUE h_size (padded lanes are exactly zero), using
    # single-pass moments: var = E[x^2] - mu^2 (clamped against f32 rounding).
    def ln_relu(x, g_ref, b_ref):
        mu = jnp.sum(x, axis=-1, keepdims=True) * inv_h
        var = jnp.sum(x * x, axis=-1, keepdims=True) * inv_h - mu * mu
        var = jnp.maximum(var, 0.0)
        y = (x - mu) * lax.rsqrt(var + LN_EPS) * g_ref[...] + b_ref[...]
        return jnp.maximum(y, 0.0)   # padded lanes stay zero (gamma/beta zero there)

    h = ln_relu(h, g1_ref, be1_ref)
    h = jnp.dot(h, w2_ref[...], preferred_element_type=jnp.float32) + b2_ref[...]
    h = ln_relu(h, g2_ref, be2_ref)

    # r = dropout(h + x_proj)  -- eval-mode dropout == identity
    # TODO(synk): training-mode dropout (pltpu.prng_random_bits mask) not implemented.
    r = h + x_proj

    # out = sigmoid(out(r)); o_pad=128 lanes stored densely (bf16), sliced outside.
    logits = jnp.dot(r, wo_ref[...], preferred_element_type=jnp.float32) + bo_ref[...]
    out_ref[...] = jax.nn.sigmoid(logits).astype(out_ref.dtype)


# ---------------------------------------------------------------------------
# Batch tiling: VMEM-budgeted, >=2 grid steps when possible (v7x megacore).
# ---------------------------------------------------------------------------
def _pick_batch_tiling(b, i_pad, h_pad, o_pad, weight_bytes):
    per_row = _bytes_per_row(i_pad, h_pad, o_pad)
    budget = max(VMEM_TILE_BUDGET - weight_bytes, 1 << 20)
    cap = max(16, min(TB_MAX, (budget // per_row) // 16 * 16))
    b16 = _round_up(max(int(b), 1), 16)          # 16-row granularity (packed sublanes)
    if b16 <= 32:
        n_tiles = 1                              # tiny batch: single tile
    else:
        n_tiles = max(2, -(-b16 // cap))         # >=2 tiles so v7x's 2 TCs both get work
    tb = min(cap, _round_up(-(-b16 // n_tiles), 16))
    return tb, n_tiles * tb


def _resnet_forward_pallas(inp, kp, o_size, h_size):
    b, i_size = inp.shape
    i_pad = kp["w_in"].shape[0]
    h_pad = kp["g_ln1"].shape[-1]
    o_pad = kp["w_out"].shape[-1]

    weight_bytes = sum(int(v.size) * v.dtype.itemsize for v in kp.values())
    tb, b_pad = _pick_batch_tiling(b, i_pad, h_pad, o_pad, weight_bytes)

    # Zero-pad batch rows (to a tile multiple) and feature columns (to i_pad).
    inp_p = jnp.pad(inp.astype(jnp.float32),
                    ((0, b_pad - b), (0, i_pad - i_size)))

    grid = (b_pad // tb,)
    kernel = functools.partial(_resnet_kernel, h_size=h_size, h_pad=h_pad)

    vmem_need = tb * _bytes_per_row(i_pad, h_pad, o_pad) + weight_bytes
    vmem_limit = int(min(max(2 * vmem_need, 16 << 20), 48 << 20))

    flops = 2 * b_pad * (i_pad * 2 * h_pad + h_pad * h_pad + h_pad * o_pad)
    transcendentals = b_pad * (o_pad + 2)          # sigmoid exps + 2 rsqrt per row
    bytes_accessed = int(inp_p.size) * 4 + weight_bytes + b_pad * o_pad * 2

    order = ("w_in", "b_in", "g_ln1", "b_ln1", "w_l2", "b_l2",
             "g_ln2", "b_ln2", "w_out", "b_out")

    def build(single_buffer_consts):
        def const_spec(arr):
            # Weights/biases: DMA'd once, VMEM-resident across all batch tiles.
            if single_buffer_consts:
                return pl.BlockSpec(arr.shape, lambda i: (0, 0),
                                    pipeline_mode=pl.Buffered(1))
            return pl.BlockSpec(arr.shape, lambda i: (0, 0))

        return pl.pallas_call(
            kernel,
            out_shape=jax.ShapeDtypeStruct((b_pad, o_pad), jnp.bfloat16),
            grid_spec=pltpu.PrefetchScalarGridSpec(
                num_scalar_prefetch=0,
                grid=grid,
                in_specs=[pl.BlockSpec((tb, i_pad), lambda i: (i, 0))]
                         + [const_spec(kp[name]) for name in order],
                out_specs=pl.BlockSpec((tb, o_pad), lambda i: (i, 0)),
            ),
            compiler_params=pltpu.CompilerParams(
                dimension_semantics=("parallel",),
                vmem_limit_bytes=vmem_limit),
            cost_estimate=pl.CostEstimate(flops=flops,
                                          transcendentals=transcendentals,
                                          bytes_accessed=bytes_accessed),
        )

    args = (inp_p,) + tuple(kp[name] for name in order)
    try:
        out = build(True)(*args)
    except Exception:
        # TODO(synk): single-buffered constants (pl.Buffered(1)) unsupported on this
        # jax/libtpu combo; fall back to default double-buffered weight specs.
        out = build(False)(*args)

    return out[:b, :o_size].astype(jnp.float32)


# ---------------------------------------------------------------------------
# Python-side module mirror: parameter init + input assembly glue.
# ---------------------------------------------------------------------------
class ResNetPallas:
    def __init__(self, pa_size, u_size, o_size, h_size=64, dropout=0.1,
                 pa_embedding_specs=None, *, key):
        self.pa = sorted(pa_size)
        self.u = sorted(u_size)
        self.pa_size = pa_size
        self.u_size = u_size
        self.o_size = o_size
        self.h_size = h_size
        self.dropout = dropout
        self.pa_embedding_specs = pa_embedding_specs or {}
        self.num_pa = [k for k in self.pa if k not in self.pa_embedding_specs]

        total_numeric = sum(pa_size[k] for k in self.num_pa)
        total_emb = sum(emb_dim for _, emb_dim in self.pa_embedding_specs.values())
        total_u = sum(u_size[k] for k in self.u)
        self.i_size = total_numeric + total_emb + total_u

        i, h, o = self.i_size, self.h_size, self.o_size
        self.i_pad = _round_up(i, LANE)
        self.h_pad = _round_up(h, LANE)
        self.o_pad = _round_up(o, LANE)

        keys = jax.random.split(key, 9 + len(self.pa_embedding_specs))
        gain = 2.0 ** 0.5  # calculate_gain('relu')

        def xavier_normal(k, fan_in, fan_out):
            std = gain * (2.0 / (fan_in + fan_out)) ** 0.5
            # stored as [in, out] (transposed vs. torch's [out, in])
            return std * jax.random.normal(k, (fan_in, fan_out), jnp.float32)

        def bias_init(k, fan_in, n):
            bound = 1.0 / (fan_in ** 0.5)   # torch nn.Linear default bias init
            return jax.random.uniform(k, (1, n), jnp.float32, -bound, bound)

        w_proj = xavier_normal(keys[0], i, h); b_proj = bias_init(keys[1], i, h)
        w_l1 = xavier_normal(keys[2], i, h);   b_l1 = bias_init(keys[3], i, h)
        w_l2 = xavier_normal(keys[4], h, h);   b_l2 = bias_init(keys[5], h, h)
        w_out = xavier_normal(keys[6], h, o);  b_out = bias_init(keys[7], h, o)
        g_ln1 = jnp.ones((1, h), jnp.float32); be_ln1 = jnp.zeros((1, h), jnp.float32)
        g_ln2 = jnp.ones((1, h), jnp.float32); be_ln2 = jnp.zeros((1, h), jnp.float32)

        # Raw (torch-equivalent) parameters, for the pure-f32 reference.
        self.raw_params = {
            "w_proj": w_proj, "b_proj": b_proj, "w_l1": w_l1, "b_l1": b_l1,
            "g_ln1": g_ln1, "b_ln1": be_ln1, "w_l2": w_l2, "b_l2": b_l2,
            "g_ln2": g_ln2, "b_ln2": be_ln2, "w_out": w_out, "b_out": b_out,
        }

        # Kernel parameters: fused proj|l1 GEMM with each half lane-padded to
        # h_pad, lane-padded l2/out GEMMs, zero-padded gamma/beta. All f32.
        ip, hp, op = self.i_pad, self.h_pad, self.o_pad

        w_in = jnp.zeros((ip, 2 * hp), jnp.float32)
        w_in = w_in.at[:i, :h].set(w_proj).at[:i, hp:hp + h].set(w_l1)
        b_in = jnp.zeros((1, 2 * hp), jnp.float32)
        b_in = b_in.at[:, :h].set(b_proj).at[:, hp:hp + h].set(b_l1)

        def pad2(m, r, c):
            out = jnp.zeros((r, c), jnp.float32)
            return out.at[:m.shape[0], :m.shape[1]].set(m)

        self.kernel_params = {
            "w_in": w_in, "b_in": b_in,
            "g_ln1": pad2(g_ln1, 1, hp), "b_ln1": pad2(be_ln1, 1, hp),
            "w_l2": pad2(w_l2, hp, hp), "b_l2": pad2(b_l2, 1, hp),
            "g_ln2": pad2(g_ln2, 1, hp), "b_ln2": pad2(be_ln2, 1, hp),
            "w_out": pad2(w_out, hp, op), "b_out": pad2(b_out, 1, op),
        }

        # Embedding tables, N(0,1) like nn.Embedding default.
        self.embeddings = {}
        for j, (k, (num_cat, emb_dim)) in enumerate(self.pa_embedding_specs.items()):
            self.embeddings[k] = jax.random.normal(keys[8 + j], (num_cat, emb_dim),
                                                   jnp.float32)

    def _assemble_input(self, pa, u):
        parts = []
        # embedding lookups (insertion order of pa_embedding_specs, like torch ModuleDict)
        for k in self.pa_embedding_specs:
            idx = jnp.squeeze(pa[k].astype(jnp.int32), axis=-1)
            parts.append(jnp.take(self.embeddings[k], idx, axis=0))
        # numeric parents
        for k in self.num_pa:
            parts.append(pa[k].astype(jnp.float32))
        # exogenous
        if len(self.u) > 0:
            parts.append(jnp.concatenate([u[k].astype(jnp.float32) for k in self.u],
                                         axis=1))
        return jnp.concatenate(parts, axis=1)

    def __call__(self, pa, u, include_inp=False):
        inp = self._assemble_input(pa, u)
        out = _resnet_forward_pallas(inp, self.kernel_params, self.o_size, self.h_size)
        if include_inp:
            return out, inp
        return out


# ---------------------------------------------------------------------------
# Pure-f32 reference mirroring the PyTorch module exactly (eval mode).
# ---------------------------------------------------------------------------
def _reference_forward(inp, rp):
    def ln(x, g, b):
        mu = jnp.mean(x, axis=-1, keepdims=True)
        var = jnp.mean(jnp.square(x - mu), axis=-1, keepdims=True)
        return (x - mu) * lax.rsqrt(var + LN_EPS) * g + b

    x_proj = inp @ rp["w_proj"] + rp["b_proj"]
    h = jax.nn.relu(ln(inp @ rp["w_l1"] + rp["b_l1"], rp["g_ln1"], rp["b_ln1"]))
    h = jax.nn.relu(ln(h @ rp["w_l2"] + rp["b_l2"], rp["g_ln2"], rp["b_ln2"]))
    r = h + x_proj
    return jax.nn.sigmoid(r @ rp["w_out"] + rp["b_out"])


if __name__ == "__main__":
    key = jax.random.PRNGKey(0)
    k_model, k_a, k_b, k_c, k_u = jax.random.split(key, 5)

    batch = 8
    pa_size = {"a": 4, "b": 3, "c": 1}           # "c" is categorical -> embedding
    u_size = {"u1": 5}
    pa_embedding_specs = {"c": (10, 6)}          # 10 categories, 6-dim embedding
    o_size = 2
    h_size = 32
    # i_size = 4 + 3 + 6 + 5 = 18

    model = ResNetPallas(pa_size, u_size, o_size, h_size=h_size,
                         dropout=0.1, pa_embedding_specs=pa_embedding_specs,
                         key=k_model)

    pa = {
        "a": jax.random.normal(k_a, (batch, 4), jnp.float32),
        "b": jax.random.normal(k_b, (batch, 3), jnp.float32),
        "c": jax.random.randint(k_c, (batch, 1), 0, 10, jnp.int32),
    }
    u = {"u1": jax.random.normal(k_u, (batch, 5), jnp.float32)}

    out, inp = model(pa, u, include_inp=True)
    out = jax.block_until_ready(out)

    ref = _reference_forward(inp, model.raw_params)
    assert out.shape == (batch, o_size), out.shape
    assert bool(jnp.all(jnp.isfinite(out))), "non-finite outputs"
    max_err = float(jnp.max(jnp.abs(out - ref)))
    assert jnp.allclose(out, ref, atol=1e-2, rtol=1e-2), f"mismatch vs reference ({max_err})"

    print("KERNEL_OK")
</pallas_src>

<mosaic_0001>
module attributes {stable_mosaic.version = 11 : i64} {
  func.func @_resnet_kernel(%arg0: i32, %arg1: memref<16x128xf32, #tpu.memory_space<vmem>>, %arg2: memref<128x256xf32, #tpu.memory_space<vmem>>, %arg3: memref<1x256xf32, #tpu.memory_space<vmem>>, %arg4: memref<1x128xf32, #tpu.memory_space<vmem>>, %arg5: memref<1x128xf32, #tpu.memory_space<vmem>>, %arg6: memref<128x128xf32, #tpu.memory_space<vmem>>, %arg7: memref<1x128xf32, #tpu.memory_space<vmem>>, %arg8: memref<1x128xf32, #tpu.memory_space<vmem>>, %arg9: memref<1x128xf32, #tpu.memory_space<vmem>>, %arg10: memref<128x128xf32, #tpu.memory_space<vmem>>, %arg11: memref<1x128xf32, #tpu.memory_space<vmem>>, %arg12: memref<16x128xbf16, #tpu.memory_space<vmem>>) attributes {dimension_semantics = [#tpu.dimension_semantics<parallel>], iteration_bounds = array<i64: 1>, scalar_prefetch = 0 : i64, scratch_operands = 0 : i64, tpu.core_type = #tpu.core_type<tc>, window_params = [{transform_indices = @transform_0, window_bounds = array<i64: 16, 128>}, {pipeline_mode = #tpu.pipeline_mode<synchronous>, transform_indices = @transform_1, window_bounds = array<i64: 128, 256>}, {pipeline_mode = #tpu.pipeline_mode<synchronous>, transform_indices = @transform_2, window_bounds = array<i64: 1, 256>}, {pipeline_mode = #tpu.pipeline_mode<synchronous>, transform_indices = @transform_3, window_bounds = array<i64: 1, 128>}, {pipeline_mode = #tpu.pipeline_mode<synchronous>, transform_indices = @transform_4, window_bounds = array<i64: 1, 128>}, {pipeline_mode = #tpu.pipeline_mode<synchronous>, transform_indices = @transform_5, window_bounds = array<i64: 128, 128>}, {pipeline_mode = #tpu.pipeline_mode<synchronous>, transform_indices = @transform_6, window_bounds = array<i64: 1, 128>}, {pipeline_mode = #tpu.pipeline_mode<synchronous>, transform_indices = @transform_7, window_bounds = array<i64: 1, 128>}, {pipeline_mode = #tpu.pipeline_mode<synchronous>, transform_indices = @transform_8, window_bounds = array<i64: 1, 128>}, {pipeline_mode = #tpu.pipeline_mode<synchronous>, transform_indices = @transform_9, window_bounds = array<i64: 128, 128>}, {pipeline_mode = #tpu.pipeline_mode<synchronous>, transform_indices = @transform_10, window_bounds = array<i64: 1, 128>}, {transform_indices = @transform_11, window_bounds = array<i64: 16, 128>}]} {
    %c0 = arith.constant 0 : index
    %c0_0 = arith.constant 0 : index
    %0 = vector.load %arg1[%c0, %c0_0] : memref<16x128xf32, #tpu.memory_space<vmem>>, vector<16x128xf32>
    %c0_1 = arith.constant 0 : index
    %c0_2 = arith.constant 0 : index
    %1 = vector.load %arg2[%c0_1, %c0_2] : memref<128x256xf32, #tpu.memory_space<vmem>>, vector<128x256xf32>
    %cst = arith.constant dense<0.000000e+00> : vector<16x256xf32>
    %2 = tpu.matmul %0, %1, %cst {dimension_numbers = #tpu.dot_dimension_numbers<[1], [0], [0], [1], [0, 0, 1, 1], [], []>} : vector<16x128xf32>, vector<128x256xf32>, vector<16x256xf32> -> vector<16x256xf32>
    %c0_3 = arith.constant 0 : index
    %c0_4 = arith.constant 0 : index
    %3 = vector.load %arg3[%c0_3, %c0_4] : memref<1x256xf32, #tpu.memory_space<vmem>>, vector<1x256xf32>
    %4 = vector.broadcast %3 : vector<1x256xf32> to vector<16x256xf32>
    %5 = arith.addf %2, %4 : vector<16x256xf32>
    %6 = vector.extract_strided_slice %5 {offsets = [0, 0], sizes = [16, 128], strides = [1, 1]} : vector<16x256xf32> to vector<16x128xf32>
    %7 = vector.extract_strided_slice %5 {offsets = [0, 128], sizes = [16, 128], strides = [1, 1]} : vector<16x256xf32> to vector<16x128xf32>
    %cst_5 = arith.constant dense<0.000000e+00> : vector<16xf32>
    %8 = vector.multi_reduction <add>, %7, %cst_5 [1] : vector<16x128xf32> to vector<16xf32>
    %9 = vector.shape_cast %8 : vector<16xf32> to vector<16x1xf32>
    %cst_6 = arith.constant 3.125000e-02 : f32
    %10 = vector.broadcast %cst_6 : f32 to vector<16x1xf32>
    %11 = arith.mulf %9, %10 : vector<16x1xf32>
    %12 = arith.mulf %7, %7 : vector<16x128xf32>
    %cst_7 = arith.constant dense<0.000000e+00> : vector<16xf32>
    %13 = vector.multi_reduction <add>, %12, %cst_7 [1] : vector<16x128xf32> to vector<16xf32>
    %14 = vector.shape_cast %13 : vector<16xf32> to vector<16x1xf32>
    %cst_8 = arith.constant 3.125000e-02 : f32
    %15 = vector.broadcast %cst_8 : f32 to vector<16x1xf32>
    %16 = arith.mulf %14, %15 : vector<16x1xf32>
    %17 = arith.mulf %11, %11 : vector<16x1xf32>
    %18 = arith.subf %16, %17 : vector<16x1xf32>
    %cst_9 = arith.constant 0.000000e+00 : f32
    %19 = vector.broadcast %cst_9 : f32 to vector<16x1xf32>
    %20 = arith.maximumf %18, %19 : vector<16x1xf32>
    %21 = vector.broadcast %11 : vector<16x1xf32> to vector<16x128xf32>
    %22 = arith.subf %7, %21 : vector<16x128xf32>
    %cst_10 = arith.constant 9.99999974E-6 : f32
    %23 = vector.broadcast %cst_10 : f32 to vector<16x1xf32>
    %24 = arith.addf %20, %23 : vector<16x1xf32>
    %25 = math.rsqrt %24 : vector<16x1xf32>
    %26 = vector.broadcast %25 : vector<16x1xf32> to vector<16x128xf32>
    %27 = arith.mulf %22, %26 : vector<16x128xf32>
    %c0_11 = arith.constant 0 : index
    %c0_12 = arith.constant 0 : index
    %28 = vector.load %arg4[%c0_11, %c0_12] : memref<1x128xf32, #tpu.memory_space<vmem>>, vector<1x128xf32>
    %29 = vector.broadcast %28 : vector<1x128xf32> to vector<16x128xf32>
    %30 = arith.mulf %27, %29 : vector<16x128xf32>
    %c0_13 = arith.constant 0 : index
    %c0_14 = arith.constant 0 : index
    %31 = vector.load %arg5[%c0_13, %c0_14] : memref<1x128xf32, #tpu.memory_space<vmem>>, vector<1x128xf32>
    %32 = vector.broadcast %31 : vector<1x128xf32> to vector<16x128xf32>
    %33 = arith.addf %30, %32 : vector<16x128xf32>
    %cst_15 = arith.constant 0.000000e+00 : f32
    %34 = vector.broadcast %cst_15 : f32 to vector<16x128xf32>
    %35 = arith.maximumf %33, %34 : vector<16x128xf32>
    %c0_16 = arith.constant 0 : index
    %c0_17 = arith.constant 0 : index
    %36 = vector.load %arg6[%c0_16, %c0_17] : memref<128x128xf32, #tpu.memory_space<vmem>>, vector<128x128xf32>
    %cst_18 = arith.constant dense<0.000000e+00> : vector<16x128xf32>
    %37 = tpu.matmul %35, %36, %cst_18 {dimension_numbers = #tpu.dot_dimension_numbers<[1], [0], [0], [1], [0, 0, 1, 1], [], []>} : vector<16x128xf32>, vector<128x128xf32>, vector<16x128xf32> -> vector<16x128xf32>
    %c0_19 = arith.constant 0 : index
    %c0_20 = arith.constant 0 : index
    %38 = vector.load %arg7[%c0_19, %c0_20] : memref<1x128xf32, #tpu.memory_space<vmem>>, vector<1x128xf32>
    %39 = vector.broadcast %38 : vector<1x128xf32> to vector<16x128xf32>
    %40 = arith.addf %37, %39 : vector<16x128xf32>
    %cst_21 = arith.constant dense<0.000000e+00> : vector<16xf32>
    %41 = vector.multi_reduction <add>, %40, %cst_21 [1] : vector<16x128xf32> to vector<16xf32>
    %42 = vector.shape_cast %41 : vector<16xf32> to vector<16x1xf32>
    %cst_22 = arith.constant 3.125000e-02 : f32
    %43 = vector.broadcast %cst_22 : f32 to vector<16x1xf32>
    %44 = arith.mulf %42, %43 : vector<16x1xf32>
    %45 = arith.mulf %40, %40 : vector<16x128xf32>
    %cst_23 = arith.constant dense<0.000000e+00> : vector<16xf32>
    %46 = vector.multi_reduction <add>, %45, %cst_23 [1] : vector<16x128xf32> to vector<16xf32>
    %47 = vector.shape_cast %46 : vector<16xf32> to vector<16x1xf32>
    %cst_24 = arith.constant 3.125000e-02 : f32
    %48 = vector.broadcast %cst_24 : f32 to vector<16x1xf32>
    %49 = arith.mulf %47, %48 : vector<16x1xf32>
    %50 = arith.mulf %44, %44 : vector<16x1xf32>
    %51 = arith.subf %49, %50 : vector<16x1xf32>
    %cst_25 = arith.constant 0.000000e+00 : f32
    %52 = vector.broadcast %cst_25 : f32 to vector<16x1xf32>
    %53 = arith.maximumf %51, %52 : vector<16x1xf32>
    %54 = vector.broadcast %44 : vector<16x1xf32> to vector<16x128xf32>
    %55 = arith.subf %40, %54 : vector<16x128xf32>
    %cst_26 = arith.constant 9.99999974E-6 : f32
    %56 = vector.broadcast %cst_26 : f32 to vector<16x1xf32>
    %57 = arith.addf %53, %56 : vector<16x1xf32>
    %58 = math.rsqrt %57 : vector<16x1xf32>
    %59 = vector.broadcast %58 : vector<16x1xf32> to vector<16x128xf32>
    %60 = arith.mulf %55, %59 : vector<16x128xf32>
    %c0_27 = arith.constant 0 : index
    %c0_28 = arith.constant 0 : index
    %61 = vector.load %arg8[%c0_27, %c0_28] : memref<1x128xf32, #tpu.memory_space<vmem>>, vector<1x128xf32>
    %62 = vector.broadcast %61 : vector<1x128xf32> to vector<16x128xf32>
    %63 = arith.mulf %60, %62 : vector<16x128xf32>
    %c0_29 = arith.constant 0 : index
    %c0_30 = arith.constant 0 : index
    %64 = vector.load %arg9[%c0_29, %c0_30] : memref<1x128xf32, #tpu.memory_space<vmem>>, vector<1x128xf32>
    %65 = vector.broadcast %64 : vector<1x128xf32> to vector<16x128xf32>
    %66 = arith.addf %63, %65 : vector<16x128xf32>
    %cst_31 = arith.constant 0.000000e+00 : f32
    %67 = vector.broadcast %cst_31 : f32 to vector<16x128xf32>
    %68 = arith.maximumf %66, %67 : vector<16x128xf32>
    %69 = arith.addf %68, %6 : vector<16x128xf32>
    %c0_32 = arith.constant 0 : index
    %c0_33 = arith.constant 0 : index
    %70 = vector.load %arg10[%c0_32, %c0_33] : memref<128x128xf32, #tpu.memory_space<vmem>>, vector<128x128xf32>
    %cst_34 = arith.constant dense<0.000000e+00> : vector<16x128xf32>
    %71 = tpu.matmul %69, %70, %cst_34 {dimension_numbers = #tpu.dot_dimension_numbers<[1], [0], [0], [1], [0, 0, 1, 1], [], []>} : vector<16x128xf32>, vector<128x128xf32>, vector<16x128xf32> -> vector<16x128xf32>
    %c0_35 = arith.constant 0 : index
    %c0_36 = arith.constant 0 : index
    %72 = vector.load %arg11[%c0_35, %c0_36] : memref<1x128xf32, #tpu.memory_space<vmem>>, vector<1x128xf32>
    %73 = vector.broadcast %72 : vector<1x128xf32> to vector<16x128xf32>
    %74 = arith.addf %71, %73 : vector<16x128xf32>
    %75 = arith.negf %74 : vector<16x128xf32>
    %76 = math.exp %75 : vector<16x128xf32>
    %cst_37 = arith.constant 1.000000e+00 : f32
    %77 = vector.broadcast %cst_37 : f32 to vector<16x128xf32>
    %78 = arith.addf %77, %76 : vector<16x128xf32>
    %79 = arith.divf %77, %78 : vector<16x128xf32>
    %80 = arith.truncf %79 : vector<16x128xf32> to vector<16x128xbf16>
    %c0_38 = arith.constant 0 : index
    %c0_39 = arith.constant 0 : index
    %81 = vector.load %arg12[%c0_38, %c0_39] : memref<16x128xbf16, #tpu.memory_space<vmem>>, vector<16x128xbf16>
    tpu.vector_store %arg12[%c0_38, %c0_39], %80 {strides = array<i32>} : memref<16x128xbf16, #tpu.memory_space<vmem>>, vector<16x128xbf16>,
    return
  }
  func.func @transform_0(%arg0: i32) -> (i32, i32) {
    %c0_i32 = arith.constant 0 : i32
    %c0_i32_0 = arith.constant 0 : i32
    return %arg0, %c0_i32 : i32, i32
  }
  func.func @transform_1(%arg0: i32) -> (i32, i32) {
    %c0_i32 = arith.constant 0 : i32
    %c0_i32_0 = arith.constant 0 : i32
    %c0_i32_1 = arith.constant 0 : i32
    return %c0_i32, %c0_i32_0 : i32, i32
  }
  func.func @transform_2(%arg0: i32) -> (i32, i32) {
    %c0_i32 = arith.constant 0 : i32
    %c0_i32_0 = arith.constant 0 : i32
    %c0_i32_1 = arith.constant 0 : i32
    return %c0_i32, %c0_i32_0 : i32, i32
  }
  func.func @transform_3(%arg0: i32) -> (i32, i32) {
    %c0_i32 = arith.constant 0 : i32
    %c0_i32_0 = arith.constant 0 : i32
    %c0_i32_1 = arith.constant 0 : i32
    return %c0_i32, %c0_i32_0 : i32, i32
  }
  func.func @transform_4(%arg0: i32) -> (i32, i32) {
    %c0_i32 = arith.constant 0 : i32
    %c0_i32_0 = arith.constant 0 : i32
    %c0_i32_1 = arith.constant 0 : i32
    return %c0_i32, %c0_i32_0 : i32, i32
  }
  func.func @transform_5(%arg0: i32) -> (i32, i32) {
    %c0_i32 = arith.constant 0 : i32
    %c0_i32_0 = arith.constant 0 : i32
    %c0_i32_1 = arith.constant 0 : i32
    return %c0_i32, %c0_i32_0 : i32, i32
  }
  func.func @transform_6(%arg0: i32) -> (i32, i32) {
    %c0_i32 = arith.constant 0 : i32
    %c0_i32_0 = arith.constant 0 : i32
    %c0_i32_1 = arith.constant 0 : i32
    return %c0_i32, %c0_i32_0 : i32, i32
  }
  func.func @transform_7(%arg0: i32) -> (i32, i32) {
    %c0_i32 = arith.constant 0 : i32
    %c0_i32_0 = arith.constant 0 : i32
    %c0_i32_1 = arith.constant 0 : i32
    return %c0_i32, %c0_i32_0 : i32, i32
  }
  func.func @transform_8(%arg0: i32) -> (i32, i32) {
    %c0_i32 = arith.constant 0 : i32
    %c0_i32_0 = arith.constant 0 : i32
    %c0_i32_1 = arith.constant 0 : i32
    return %c0_i32, %c0_i32_0 : i32, i32
  }
  func.func @transform_9(%arg0: i32) -> (i32, i32) {
    %c0_i32 = arith.constant 0 : i32
    %c0_i32_0 = arith.constant 0 : i32
    %c0_i32_1 = arith.constant 0 : i32
    return %c0_i32, %c0_i32_0 : i32, i32
  }
  func.func @transform_10(%arg0: i32) -> (i32, i32) {
    %c0_i32 = arith.constant 0 : i32
    %c0_i32_0 = arith.constant 0 : i32
    %c0_i32_1 = arith.constant 0 : i32
    return %c0_i32, %c0_i32_0 : i32, i32
  }
  func.func @transform_11(%arg0: i32) -> (i32, i32) {
    %c0_i32 = arith.constant 0 : i32
    %c0_i32_0 = arith.constant 0 : i32
    return %arg0, %c0_i32 : i32, i32
  }
}

module attributes {stable_mosaic.version = 11 : i64} {
  func.func @_resnet_kernel(%arg0: i32, %arg1: memref<16x128xf32, #tpu.memory_space<vmem>>, %arg2: memref<128x256xf32, #tpu.memory_space<vmem>>, %arg3: memref<1x256xf32, #tpu.memory_space<vmem>>, %arg4: memref<1x128xf32, #tpu.memory_space<vmem>>, %arg5: memref<1x128xf32, #tpu.memory_space<vmem>>, %arg6: memref<128x128xf32, #tpu.memory_space<vmem>>, %arg7: memref<1x128xf32, #tpu.memory_space<vmem>>, %arg8: memref<1x128xf32, #tpu.memory_space<vmem>>, %arg9: memref<1x128xf32, #tpu.memory_space<vmem>>, %arg10: memref<128x128xf32, #tpu.memory_space<vmem>>, %arg11: memref<1x128xf32, #tpu.memory_space<vmem>>, %arg12: memref<16x128xbf16, #tpu.memory_space<vmem>>) attributes {dimension_semantics = [#tpu.dimension_semantics<parallel>], iteration_bounds = array<i64: 1>, scalar_prefetch = 0 : i64, scratch_operands = 0 : i64, tpu.core_type = #tpu.core_type<tc>, window_params = [{transform_indices = @transform_0, window_bounds = array<i64: 16, 128>}, {pipeline_mode = #tpu.pipeline_mode<synchronous>, transform_indices = @transform_1, window_bounds = array<i64: 128, 256>}, {pipeline_mode = #tpu.pipeline_mode<synchronous>, transform_indices = @transform_2, window_bounds = array<i64: 1, 256>}, {pipeline_mode = #tpu.pipeline_mode<synchronous>, transform_indices = @transform_3, window_bounds = array<i64: 1, 128>}, {pipeline_mode = #tpu.pipeline_mode<synchronous>, transform_indices = @transform_4, window_bounds = array<i64: 1, 128>}, {pipeline_mode = #tpu.pipeline_mode<synchronous>, transform_indices = @transform_5, window_bounds = array<i64: 128, 128>}, {pipeline_mode = #tpu.pipeline_mode<synchronous>, transform_indices = @transform_6, window_bounds = array<i64: 1, 128>}, {pipeline_mode = #tpu.pipeline_mode<synchronous>, transform_indices = @transform_7, window_bounds = array<i64: 1, 128>}, {pipeline_mode = #tpu.pipeline_mode<synchronous>, transform_indices = @transform_8, window_bounds = array<i64: 1, 128>}, {pipeline_mode = #tpu.pipeline_mode<synchronous>, transform_indices = @transform_9, window_bounds = array<i64: 128, 128>}, {pipeline_mode = #tpu.pipeline_mode<synchronous>, transform_indices = @transform_10, window_bounds = array<i64: 1, 128>}, {transform_indices = @transform_11, window_bounds = array<i64: 16, 128>}]} {
    %c0 = arith.constant 0 : index
    %c0_0 = arith.constant 0 : index
    %0 = vector.load %arg1[%c0, %c0_0] : memref<16x128xf32, #tpu.memory_space<vmem>>, vector<16x128xf32>
    %c0_1 = arith.constant 0 : index
    %c0_2 = arith.constant 0 : index
    %1 = vector.load %arg2[%c0_1, %c0_2] : memref<128x256xf32, #tpu.memory_space<vmem>>, vector<128x256xf32>
    %cst = arith.constant dense<0.000000e+00> : vector<16x256xf32>
    %2 = tpu.matmul %0, %1, %cst {dimension_numbers = #tpu.dot_dimension_numbers<[1], [0], [0], [1], [0, 0, 1, 1], [], []>} : vector<16x128xf32>, vector<128x256xf32>, vector<16x256xf32> -> vector<16x256xf32>
    %c0_3 = arith.constant 0 : index
    %c0_4 = arith.constant 0 : index
    %3 = vector.load %arg3[%c0_3, %c0_4] : memref<1x256xf32, #tpu.memory_space<vmem>>, vector<1x256xf32>
    %4 = vector.broadcast %3 : vector<1x256xf32> to vector<16x256xf32>
    %5 = arith.addf %2, %4 : vector<16x256xf32>
    %6 = vector.extract_strided_slice %5 {offsets = [0, 0], sizes = [16, 128], strides = [1, 1]} : vector<16x256xf32> to vector<16x128xf32>
    %7 = vector.extract_strided_slice %5 {offsets = [0, 128], sizes = [16, 128], strides = [1, 1]} : vector<16x256xf32> to vector<16x128xf32>
    %cst_5 = arith.constant dense<0.000000e+00> : vector<16xf32>
    %8 = vector.multi_reduction <add>, %7, %cst_5 [1] : vector<16x128xf32> to vector<16xf32>
    %9 = vector.shape_cast %8 : vector<16xf32> to vector<16x1xf32>
    %cst_6 = arith.constant 3.125000e-02 : f32
    %10 = vector.broadcast %cst_6 : f32 to vector<16x1xf32>
    %11 = arith.mulf %9, %10 : vector<16x1xf32>
    %12 = arith.mulf %7, %7 : vector<16x128xf32>
    %cst_7 = arith.constant dense<0.000000e+00> : vector<16xf32>
    %13 = vector.multi_reduction <add>, %12, %cst_7 [1] : vector<16x128xf32> to vector<16xf32>
    %14 = vector.shape_cast %13 : vector<16xf32> to vector<16x1xf32>
    %cst_8 = arith.constant 3.125000e-02 : f32
    %15 = vector.broadcast %cst_8 : f32 to vector<16x1xf32>
    %16 = arith.mulf %14, %15 : vector<16x1xf32>
    %17 = arith.mulf %11, %11 : vector<16x1xf32>
    %18 = arith.subf %16, %17 : vector<16x1xf32>
    %cst_9 = arith.constant 0.000000e+00 : f32
    %19 = vector.broadcast %cst_9 : f32 to vector<16x1xf32>
    %20 = arith.maximumf %18, %19 : vector<16x1xf32>
    %21 = vector.broadcast %11 : vector<16x1xf32> to vector<16x128xf32>
    %22 = arith.subf %7, %21 : vector<16x128xf32>
    %cst_10 = arith.constant 9.99999974E-6 : f32
    %23 = vector.broadcast %cst_10 : f32 to vector<16x1xf32>
    %24 = arith.addf %20, %23 : vector<16x1xf32>
    %25 = math.rsqrt %24 : vector<16x1xf32>
    %26 = vector.broadcast %25 : vector<16x1xf32> to vector<16x128xf32>
    %27 = arith.mulf %22, %26 : vector<16x128xf32>
    %c0_11 = arith.constant 0 : index
    %c0_12 = arith.constant 0 : index
    %28 = vector.load %arg4[%c0_11, %c0_12] : memref<1x128xf32, #tpu.memory_space<vmem>>, vector<1x128xf32>
    %29 = vector.broadcast %28 : vector<1x128xf32> to vector<16x128xf32>
    %30 = arith.mulf %27, %29 : vector<16x128xf32>
    %c0_13 = arith.constant 0 : index
    %c0_14 = arith.constant 0 : index
    %31 = vector.load %arg5[%c0_13, %c0_14] : memref<1x128xf32, #tpu.memory_space<vmem>>, vector<1x128xf32>
    %32 = vector.broadcast %31 : vector<1x128xf32> to vector<16x128xf32>
    %33 = arith.addf %30, %32 : vector<16x128xf32>
    %cst_15 = arith.constant 0.000000e+00 : f32
    %34 = vector.broadcast %cst_15 : f32 to vector<16x128xf32>
    %35 = arith.maximumf %33, %34 : vector<16x128xf32>
    %c0_16 = arith.constant 0 : index
    %c0_17 = arith.constant 0 : index
    %36 = vector.load %arg6[%c0_16, %c0_17] : memref<128x128xf32, #tpu.memory_space<vmem>>, vector<128x128xf32>
    %cst_18 = arith.constant dense<0.000000e+00> : vector<16x128xf32>
    %37 = tpu.matmul %35, %36, %cst_18 {dimension_numbers = #tpu.dot_dimension_numbers<[1], [0], [0], [1], [0, 0, 1, 1], [], []>} : vector<16x128xf32>, vector<128x128xf32>, vector<16x128xf32> -> vector<16x128xf32>
    %c0_19 = arith.constant 0 : index
    %c0_20 = arith.constant 0 : index
    %38 = vector.load %arg7[%c0_19, %c0_20] : memref<1x128xf32, #tpu.memory_space<vmem>>, vector<1x128xf32>
    %39 = vector.broadcast %38 : vector<1x128xf32> to vector<16x128xf32>
    %40 = arith.addf %37, %39 : vector<16x128xf32>
    %cst_21 = arith.constant dense<0.000000e+00> : vector<16xf32>
    %41 = vector.multi_reduction <add>, %40, %cst_21 [1] : vector<16x128xf32> to vector<16xf32>
    %42 = vector.shape_cast %41 : vector<16xf32> to vector<16x1xf32>
    %cst_22 = arith.constant 3.125000e-02 : f32
    %43 = vector.broadcast %cst_22 : f32 to vector<16x1xf32>
    %44 = arith.mulf %42, %43 : vector<16x1xf32>
    %45 = arith.mulf %40, %40 : vector<16x128xf32>
    %cst_23 = arith.constant dense<0.000000e+00> : vector<16xf32>
    %46 = vector.multi_reduction <add>, %45, %cst_23 [1] : vector<16x128xf32> to vector<16xf32>
    %47 = vector.shape_cast %46 : vector<16xf32> to vector<16x1xf32>
    %cst_24 = arith.constant 3.125000e-02 : f32
    %48 = vector.broadcast %cst_24 : f32 to vector<16x1xf32>
    %49 = arith.mulf %47, %48 : vector<16x1xf32>
    %50 = arith.mulf %44, %44 : vector<16x1xf32>
    %51 = arith.subf %49, %50 : vector<16x1xf32>
    %cst_25 = arith.constant 0.000000e+00 : f32
    %52 = vector.broadcast %cst_25 : f32 to vector<16x1xf32>
    %53 = arith.maximumf %51, %52 : vector<16x1xf32>
    %54 = vector.broadcast %44 : vector<16x1xf32> to vector<16x128xf32>
    %55 = arith.subf %40, %54 : vector<16x128xf32>
    %cst_26 = arith.constant 9.99999974E-6 : f32
    %56 = vector.broadcast %cst_26 : f32 to vector<16x1xf32>
    %57 = arith.addf %53, %56 : vector<16x1xf32>
    %58 = math.rsqrt %57 : vector<16x1xf32>
    %59 = vector.broadcast %58 : vector<16x1xf32> to vector<16x128xf32>
    %60 = arith.mulf %55, %59 : vector<16x128xf32>
    %c0_27 = arith.constant 0 : index
    %c0_28 = arith.constant 0 : index
    %61 = vector.load %arg8[%c0_27, %c0_28] : memref<1x128xf32, #tpu.memory_space<vmem>>, vector<1x128xf32>
    %62 = vector.broadcast %61 : vector<1x128xf32> to vector<16x128xf32>
    %63 = arith.mulf %60, %62 : vector<16x128xf32>
    %c0_29 = arith.constant 0 : index
    %c0_30 = arith.constant 0 : index
    %64 = vector.load %arg9[%c0_29, %c0_30] : memref<1x128xf32, #tpu.memory_space<vmem>>, vector<1x128xf32>
    %65 = vector.broadcast %64 : vector<1x128xf32> to vector<16x128xf32>
    %66 = arith.addf %63, %65 : vector<16x128xf32>
    %cst_31 = arith.constant 0.000000e+00 : f32
    %67 = vector.broadcast %cst_31 : f32 to vector<16x128xf32>
    %68 = arith.maximumf %66, %67 : vector<16x128xf32>
    %69 = arith.addf %68, %6 : vector<16x128xf32>
    %c0_32 = arith.constant 0 : index
    %c0_33 = arith.constant 0 : index
    %70 = vector.load %arg10[%c0_32, %c0_33] : memref<128x128xf32, #tpu.memory_space<vmem>>, vector<128x128xf32>
    %cst_34 = arith.constant dense<0.000000e+00> : vector<16x128xf32>
    %71 = tpu.matmul %69, %70, %cst_34 {dimension_numbers = #tpu.dot_dimension_numbers<[1], [0], [0], [1], [0, 0, 1, 1], [], []>} : vector<16x128xf32>, vector<128x128xf32>, vector<16x128xf32> -> vector<16x128xf32>
    %c0_35 = arith.constant 0 : index
    %c0_36 = arith.constant 0 : index
    %72 = vector.load %arg11[%c0_35, %c0_36] : memref<1x128xf32, #tpu.memory_space<vmem>>, vector<1x128xf32>
    %73 = vector.broadcast %72 : vector<1x128xf32> to vector<16x128xf32>
    %74 = arith.addf %71, %73 : vector<16x128xf32>
    %75 = arith.negf %74 : vector<16x128xf32>
    %76 = math.exp %75 : vector<16x128xf32>
    %cst_37 = arith.constant 1.000000e+00 : f32
    %77 = vector.broadcast %cst_37 : f32 to vector<16x128xf32>
    %78 = arith.addf %77, %76 : vector<16x128xf32>
    %79 = arith.divf %77, %78 : vector<16x128xf32>
    %80 = arith.truncf %79 : vector<16x128xf32> to vector<16x128xbf16>
    %c0_38 = arith.constant 0 : index
    %c0_39 = arith.constant 0 : index
    %81 = vector.load %arg12[%c0_38, %c0_39] : memref<16x128xbf16, #tpu.memory_space<vmem>>, vector<16x128xbf16>
    tpu.vector_store %arg12[%c0_38, %c0_39], %80 {strides = array<i32>} : memref<16x128xbf16, #tpu.memory_space<vmem>>, vector<16x128xbf16>,
    return
  }
  func.func @transform_0(%arg0: i32) -> (i32, i32) {
    %c0_i32 = arith.constant 0 : i32
    %c0_i32_0 = arith.constant 0 : i32
    return %arg0, %c0_i32 : i32, i32
  }
  func.func @transform_1(%arg0: i32) -> (i32, i32) {
    %c0_i32 = arith.constant 0 : i32
    %c0_i32_0 = arith.constant 0 : i32
    %c0_i32_1 = arith.constant 0 : i32
    return %c0_i32, %c0_i32_0 : i32, i32
  }
  func.func @transform_2(%arg0: i32) -> (i32, i32) {
    %c0_i32 = arith.constant 0 : i32
    %c0_i32_0 = arith.constant 0 : i32
    %c0_i32_1 = arith.constant 0 : i32
    return %c0_i32, %c0_i32_0 : i32, i32
  }
  func.func @transform_3(%arg0: i32) -> (i32, i32) {
    %c0_i32 = arith.constant 0 : i32
    %c0_i32_0 = arith.constant 0 : i32
    %c0_i32_1 = arith.constant 0 : i32
    return %c0_i32, %c0_i32_0 : i32, i32
  }
  func.func @transform_4(%arg0: i32) -> (i32, i32) {
    %c0_i32 = arith.constant 0 : i32
    %c0_i32_0 = arith.constant 0 : i32
    %c0_i32_1 = arith.constant 0 : i32
    return %c0_i32, %c0_i32_0 : i32, i32
  }
  func.func @transform_5(%arg0: i32) -> (i32, i32) {
    %c0_i32 = arith.constant 0 : i32
    %c0_i32_0 = arith.constant 0 : i32
    %c0_i32_1 = arith.constant 0 : i32
    return %c0_i32, %c0_i32_0 : i32, i32
  }
  func.func @transform_6(%arg0: i32) -> (i32, i32) {
    %c0_i32 = arith.constant 0 : i32
    %c0_i32_0 = arith.constant 0 : i32
    %c0_i32_1 = arith.constant 0 : i32
    return %c0_i32, %c0_i32_0 : i32, i32
  }
  func.func @transform_7(%arg0: i32) -> (i32, i32) {
    %c0_i32 = arith.constant 0 : i32
    %c0_i32_0 = arith.constant 0 : i32
    %c0_i32_1 = arith.constant 0 : i32
    return %c0_i32, %c0_i32_0 : i32, i32
  }
  func.func @transform_8(%arg0: i32) -> (i32, i32) {
    %c0_i32 = arith.constant 0 : i32
    %c0_i32_0 = arith.constant 0 : i32
    %c0_i32_1 = arith.constant 0 : i32
    return %c0_i32, %c0_i32_0 : i32, i32
  }
  func.func @transform_9(%arg0: i32) -> (i32, i32) {
    %c0_i32 = arith.constant 0 : i32
    %c0_i32_0 = arith.constant 0 : i32
    %c0_i32_1 = arith.constant 0 : i32
    return %c0_i32, %c0_i32_0 : i32, i32
  }
  func.func @transform_10(%arg0: i32) -> (i32, i32) {
    %c0_i32 = arith.constant 0 : i32
    %c0_i32_0 = arith.constant 0 : i32
    %c0_i32_1 = arith.constant 0 : i32
    return %c0_i32, %c0_i32_0 : i32, i32
  }
  func.func @transform_11(%arg0: i32) -> (i32, i32) {
    %c0_i32 = arith.constant 0 : i32
    %c0_i32_0 = arith.constant 0 : i32
    return %arg0, %c0_i32 : i32, i32
  }
}

</mosaic_0001>

<llo_original>
// kernel: tpu_custom_call.1
$region0: #{tpu_custom_call.1}
  #allocation0 [shape = 'u32[]', space=smem, size = 0x4, offset = 0x4, fixed_abs, tag = 'smem constant byte address 0x4 - core index']
  #allocation1 [shape = 'u32[72,128]{1,0:T(1,128)}', space=vmem, size = 0x9000, scoped, tag = 'internal scratch']
  %s0 = inlined_call_operand.hbm [shape: f32[16,128], index: 0, kind: input, shape index: {}]
  %s1 = inlined_call_operand.hbm [shape: f32[128,256], index: 1, kind: input, shape index: {}]
  %s2 = inlined_call_operand.hbm [shape: f32[1,256], index: 2, kind: input, shape index: {}]
  %s3 = inlined_call_operand.vmem [shape: f32[1,128], index: 3, kind: input, shape index: {}]
  %s4 = inlined_call_operand.vmem [shape: f32[1,128], index: 4, kind: input, shape index: {}]
  %s5 = inlined_call_operand.hbm [shape: f32[128,128], index: 5, kind: input, shape index: {}]
  %s6 = inlined_call_operand.vmem [shape: f32[1,128], index: 6, kind: input, shape index: {}]
  %s7 = inlined_call_operand.vmem [shape: f32[1,128], index: 7, kind: input, shape index: {}]
  %s8 = inlined_call_operand.vmem [shape: f32[1,128], index: 8, kind: input, shape index: {}]
  %s9 = inlined_call_operand.hbm [shape: f32[128,128], index: 9, kind: input, shape index: {}]
  %s10 = inlined_call_operand.vmem [shape: f32[1,128], index: 10, kind: input, shape index: {}]
  %s11 = inlined_call_operand.hbm [shape: bf16[16,128], index: 11, kind: output, shape index: {}]
  %s12 = sld [smem:[#allocation0]]
  $region74: #{tpu_custom_call.1} parent=0
    _
  %s14 = ssub.s32 1, %s12
  %s15 = scalar_select 0, %s14, %s12
  $region1: #{tpu_custom_call.1} parent=0
    #allocation2 [shape = 'u8[8192]{0}', space=vmem, size = 0x2000, scoped, tag = 'input window, operand 0, single buffered']
    #allocation3 [shape = 's32[1]{0}', space=sflag, size = 0x4, scoped, tag = 'scoped memory for tpu_custom_call.1']
    #allocation4 [shape = 's32[1]{0}', space=sflag, size = 0x4, scoped, tag = 'scoped memory for tpu_custom_call.1']
    #allocation5 [shape = 'u8[131072]{0}', space=vmem, size = 0x20000, scoped, tag = 'input window, operand 1, single buffered']
    #allocation6 [shape = 's32[1]{0}', space=sflag, size = 0x4, scoped, tag = 'scoped memory for tpu_custom_call.1']
    #allocation7 [shape = 'u8[1024]{0}', space=vmem, size = 0x400, scoped, tag = 'input window, operand 2, single buffered']
    #allocation8 [shape = 'u8[65536]{0}', space=vmem, size = 0x10000, scoped, tag = 'input window, operand 5, single buffered']
    #allocation9 [shape = 's32[1]{0}', space=sflag, size = 0x4, scoped, tag = 'scoped memory for tpu_custom_call.1']
    #allocation10 [shape = 'u8[65536]{0}', space=vmem, size = 0x10000, scoped, tag = 'input window, operand 9, single buffered']
    #allocation11 [shape = 'u8[4096]{0}', space=vmem, size = 0x1000, scoped, tag = 'output window, operand 0, single buffered']
    %16 = vsyncpa [#allocation3], 0
    %17 = vsyncpa [#allocation6], 0
    %18 = vsyncpa [#allocation9], 0
    %19 = vsyncpa [#allocation4], 0
    // Predicated region
    $region2: #{tpu_custom_call.1} parent=1 // pred_check
      _
    $region3: #{tpu_custom_call.1} parent=1 // pred_check_branch
      %21 = sbr.rel (0) target = $region5
    $region4: #{tpu_custom_call.1} parent=1 // pred_region
      %23 = vsyncadd [#allocation3], 0
      %s24 = sshll.u32 %s0, 4
      %s25 = int_to_ptr.hbm [resolvable:$true] %s24
      %s26 = sshll.u32 [#allocation2], 4
      %s27 = int_to_ptr.vmem [resolvable:$true] %s26
      %32 = dma.hbm_to_vmem [thread:$0]  %s25, 256, %s27, [#allocation3], 128, 128, 8
    $region5: #{tpu_custom_call.1} parent=1 // pred_fallthru
      _
    // Predicated region
    $region6: #{tpu_custom_call.1} parent=1 // pred_check
      _
    $region7: #{tpu_custom_call.1} parent=1 // pred_check_branch
      %34 = sbr.rel (0) target = $region9
    $region8: #{tpu_custom_call.1} parent=1 // pred_region
      %36 = vsyncadd [#allocation6], 0
      %s37 = sshll.u32 %s1, 4
      %s38 = int_to_ptr.hbm [resolvable:$true] %s37
      %s39 = sshll.u32 [#allocation5], 4
      %s40 = int_to_ptr.vmem [resolvable:$true] %s39
      %45 = dma.hbm_to_vmem [thread:$0]  %s38, 4096, %s40, [#allocation6], 256, 256, 16
    $region9: #{tpu_custom_call.1} parent=1 // pred_fallthru
      _
    // Predicated region
    $region10: #{tpu_custom_call.1} parent=1 // pred_check
      _
    $region11: #{tpu_custom_call.1} parent=1 // pred_check_branch
      %47 = sbr.rel (0) target = $region13
    $region12: #{tpu_custom_call.1} parent=1 // pred_region
      %49 = vsyncadd [#allocation6], 0
      %s51 = sshll.u32 %s2, 4
      %s52 = int_to_ptr.hbm [resolvable:$true] %s51
      %s53 = sshll.u32 [#allocation7], 4
      %s54 = int_to_ptr.vmem [resolvable:$true] %s53
      %56 = dma.hbm_to_vmem [thread:$0]  %s52, 32, %s54, [#allocation6]
    $region13: #{tpu_custom_call.1} parent=1 // pred_fallthru
      _
    // Predicated region
    $region14: #{tpu_custom_call.1} parent=1 // pred_check
      _
    $region15: #{tpu_custom_call.1} parent=1 // pred_check_branch
      %58 = sbr.rel (0) target = $region17
    $region16: #{tpu_custom_call.1} parent=1 // pred_region
      _
    $region17: #{tpu_custom_call.1} parent=1 // pred_fallthru
      _
    // Predicated region
    $region18: #{tpu_custom_call.1} parent=1 // pred_check
      _
    $region19: #{tpu_custom_call.1} parent=1 // pred_check_branch
      %60 = sbr.rel (0) target = $region21
    $region20: #{tpu_custom_call.1} parent=1 // pred_region
      _
    $region21: #{tpu_custom_call.1} parent=1 // pred_fallthru
      _
    // Predicated region
    $region22: #{tpu_custom_call.1} parent=1 // pred_check
      _
    $region23: #{tpu_custom_call.1} parent=1 // pred_check_branch
      %62 = sbr.rel (0) target = $region25
    $region24: #{tpu_custom_call.1} parent=1 // pred_region
      %64 = vsyncadd [#allocation9], 0
      %s65 = sshll.u32 %s5, 4
      %s66 = int_to_ptr.hbm [resolvable:$true] %s65
      %s67 = sshll.u32 [#allocation8], 4
      %s68 = int_to_ptr.vmem [resolvable:$true] %s67
      %73 = dma.hbm_to_vmem [thread:$0]  %s66, 2048, %s68, [#allocation9], 128, 128, 8
    $region25: #{tpu_custom_call.1} parent=1 // pred_fallthru
      _
    // Predicated region
    $region26: #{tpu_custom_call.1} parent=1 // pred_check
      _
    $region27: #{tpu_custom_call.1} parent=1 // pred_check_branch
      %75 = sbr.rel (0) target = $region29
    $region28: #{tpu_custom_call.1} parent=1 // pred_region
      _
    $region29: #{tpu_custom_call.1} parent=1 // pred_fallthru
      _
    // Predicated region
    $region30: #{tpu_custom_call.1} parent=1 // pred_check
      _
    $region31: #{tpu_custom_call.1} parent=1 // pred_check_branch
      %77 = sbr.rel (0) target = $region33
    $region32: #{tpu_custom_call.1} parent=1 // pred_region
      _
    $region33: #{tpu_custom_call.1} parent=1 // pred_fallthru
      _
    // Predicated region
    $region34: #{tpu_custom_call.1} parent=1 // pred_check
      _
    $region35: #{tpu_custom_call.1} parent=1 // pred_check_branch
      %79 = sbr.rel (0) target = $region37
    $region36: #{tpu_custom_call.1} parent=1 // pred_region
      _
    $region37: #{tpu_custom_call.1} parent=1 // pred_fallthru
      _
    // Predicated region
    $region38: #{tpu_custom_call.1} parent=1 // pred_check
      _
    $region39: #{tpu_custom_call.1} parent=1 // pred_check_branch
      %81 = sbr.rel (0) target = $region41
    $region40: #{tpu_custom_call.1} parent=1 // pred_region
      %83 = vsyncadd [#allocation9], 0
      %s84 = sshll.u32 %s9, 4
      %s85 = int_to_ptr.hbm [resolvable:$true] %s84
      %s86 = sshll.u32 [#allocation10], 4
      %s87 = int_to_ptr.vmem [resolvable:$true] %s86
      %92 = dma.hbm_to_vmem [thread:$0]  %s85, 2048, %s87, [#allocation9], 128, 128, 8
    $region41: #{tpu_custom_call.1} parent=1 // pred_fallthru
      _
    // Predicated region
    $region42: #{tpu_custom_call.1} parent=1 // pred_check
      _
    $region43: #{tpu_custom_call.1} parent=1 // pred_check_branch
      %94 = sbr.rel (0) target = $region45
    $region44: #{tpu_custom_call.1} parent=1 // pred_region
      _
    $region45: #{tpu_custom_call.1} parent=1 // pred_fallthru
      _
    // Predicated region
    $region46: #{tpu_custom_call.1} parent=1 // pred_check
      _
    $region47: #{tpu_custom_call.1} parent=1 // pred_check_branch
      %96 = sbr.rel (0) target = $region49
    $region48: #{tpu_custom_call.1} parent=1 // pred_region
      %98 = dma.done [#allocation3], 256
    $region49: #{tpu_custom_call.1} parent=1 // pred_fallthru
      _
    // Predicated region
    $region50: #{tpu_custom_call.1} parent=1 // pred_check
      _
    $region51: #{tpu_custom_call.1} parent=1 // pred_check_branch
      %100 = sbr.rel (0) target = $region53
    $region52: #{tpu_custom_call.1} parent=1 // pred_region
      %102 = dma.done [#allocation6], 4096
    $region53: #{tpu_custom_call.1} parent=1 // pred_fallthru
      _
    // Predicated region
    $region54: #{tpu_custom_call.1} parent=1 // pred_check
      _
    $region55: #{tpu_custom_call.1} parent=1 // pred_check_branch
      %104 = sbr.rel (0) target = $region57
    $region56: #{tpu_custom_call.1} parent=1 // pred_region
      %106 = dma.done [#allocation6], 32
    $region57: #{tpu_custom_call.1} parent=1 // pred_fallthru
      _
    // Predicated region
    $region58: #{tpu_custom_call.1} parent=1 // pred_check
      _
    $region59: #{tpu_custom_call.1} parent=1 // pred_check_branch
      %108 = sbr.rel (0) target = $region61
    $region60: #{tpu_custom_call.1} parent=1 // pred_region
      %110 = dma.done [#allocation9], 2048
    $region61: #{tpu_custom_call.1} parent=1 // pred_fallthru
      _
    // Predicated region
    $region62: #{tpu_custom_call.1} parent=1 // pred_check
      _
    $region63: #{tpu_custom_call.1} parent=1 // pred_check_branch
      %112 = sbr.rel (0) target = $region65
    $region64: #{tpu_custom_call.1} parent=1 // pred_region
      %114 = dma.done [#allocation9], 2048
    $region65: #{tpu_custom_call.1} parent=1 // pred_fallthru
      _
    %v115 = vld [vmem:[#allocation2] sm:$0xff]
    %v116 = vld [vmem:[#allocation2 + $0x8] sm:$0xff]
    %v117 = vld [vmem:[#allocation5] sm:$0xff]
    %v118 = vld [vmem:[#allocation5 + $0x8] sm:$0xff]
    %v119 = vld [vmem:[#allocation5 + $0x10] sm:$0xff]
    %v120 = vld [vmem:[#allocation5 + $0x18] sm:$0xff]
    %v121 = vld [vmem:[#allocation5 + $0x20] sm:$0xff]
    %v122 = vld [vmem:[#allocation5 + $0x28] sm:$0xff]
    %v123 = vld [vmem:[#allocation5 + $0x30] sm:$0xff]
    %v124 = vld [vmem:[#allocation5 + $0x38] sm:$0xff]
    %v125 = vld [vmem:[#allocation5 + $0x40] sm:$0xff]
    %v126 = vld [vmem:[#allocation5 + $0x48] sm:$0xff]
    %v127 = vld [vmem:[#allocation5 + $0x50] sm:$0xff]
    %v128 = vld [vmem:[#allocation5 + $0x58] sm:$0xff]
    %v129 = vld [vmem:[#allocation5 + $0x60] sm:$0xff]
    %v130 = vld [vmem:[#allocation5 + $0x68] sm:$0xff]
    %v131 = vld [vmem:[#allocation5 + $0x70] sm:$0xff]
    %v132 = vld [vmem:[#allocation5 + $0x78] sm:$0xff]
    %v133 = vld [vmem:[#allocation5 + $0x80] sm:$0xff]
    %v134 = vld [vmem:[#allocation5 + $0x88] sm:$0xff]
    %v135 = vld [vmem:[#allocation5 + $0x90] sm:$0xff]
    %v136 = vld [vmem:[#allocation5 + $0x98] sm:$0xff]
    %v137 = vld [vmem:[#allocation5 + $0xa0] sm:$0xff]
    %v138 = vld [vmem:[#allocation5 + $0xa8] sm:$0xff]
    %v139 = vld [vmem:[#allocation5 + $0xb0] sm:$0xff]
    %v140 = vld [vmem:[#allocation5 + $0xb8] sm:$0xff]
    %v141 = vld [vmem:[#allocation5 + $0xc0] sm:$0xff]
    %v142 = vld [vmem:[#allocation5 + $0xc8] sm:$0xff]
    %v143 = vld [vmem:[#allocation5 + $0xd0] sm:$0xff]
    %v144 = vld [vmem:[#allocation5 + $0xd8] sm:$0xff]
    %v145 = vld [vmem:[#allocation5 + $0xe0] sm:$0xff]
    %v146 = vld [vmem:[#allocation5 + $0xe8] sm:$0xff]
    %v147 = vld [vmem:[#allocation5 + $0xf0] sm:$0xff]
    %v148 = vld [vmem:[#allocation5 + $0xf8] sm:$0xff]
    %v149 = vld [vmem:[#allocation7] sm:$0x3]
    %v151 = vperm.slane %v149, 0
    %v152 = vperm.slane %v149, 1
    %155 = vmatpush.msra.mxu0 %v147
    %156 = vmatpush.msra.mxu0 %v145
    %157 = vmatpush.msra.mxu0 %v143
    %158 = vmatpush.msra.mxu0 %v141
    %159 = vmatpush.msra.mxu0 %v139
    %160 = vmatpush.msra.mxu0 %v137
    %161 = vmatpush.msra.mxu0 %v135
    %162 = vmatpush.msra.mxu0 %v133
    %163 = vmatpush.msra.mxu0 %v131
    %164 = vmatpush.msra.mxu0 %v129
    %165 = vmatpush.msra.mxu0 %v127
    %166 = vmatpush.msra.mxu0 %v125
    %167 = vmatpush.msra.mxu0 %v123
    %168 = vmatpush.msra.mxu0 %v121
    %169 = vmatpush.msra.mxu0 %v119
    %170 = vmatpush.msra.mxu0 %v117
    %171 = vmatmul.f32.gmra.mxu0 %v115
    %v172 = vpop.f32.mrf.mxu0
    %v173 = vadd.f32 %v151, %v172
    %174 = vmatmul.f32.gmra.mxu0 %v116
    %v175 = vpop.f32.mrf.mxu0
    %v176 = vadd.f32 %v151, %v175
    %177 = vdwg.mxu0
    %178 = vmatpush.msra.mxu0 %v148
    %179 = vmatpush.msra.mxu0 %v146
    %180 = vmatpush.msra.mxu0 %v144
    %181 = vmatpush.msra.mxu0 %v142
    %182 = vmatpush.msra.mxu0 %v140
    %183 = vmatpush.msra.mxu0 %v138
    %184 = vmatpush.msra.mxu0 %v136
    %185 = vmatpush.msra.mxu0 %v134
    %186 = vmatpush.msra.mxu0 %v132
    %187 = vmatpush.msra.mxu0 %v130
    %188 = vmatpush.msra.mxu0 %v128
    %189 = vmatpush.msra.mxu0 %v126
    %190 = vmatpush.msra.mxu0 %v124
    %191 = vmatpush.msra.mxu0 %v122
    %192 = vmatpush.msra.mxu0 %v120
    %193 = vmatpush.msra.mxu0 %v118
    %194 = vmatmul.f32.gmra.mxu0 %v115
    %v195 = vpop.f32.mrf.mxu0
    %v196 = vadd.f32 %v152, %v195
    %197 = vmatmul.f32.gmra.mxu0 %v116
    %v198 = vpop.f32.mrf.mxu0
    %v199 = vadd.f32 %v152, %v198
    %200 = vdwg.mxu0
    %201 = vadd.xlane.f32.xlu0 %v196
    %v202 = vpop.xlane.xlu0 %201
    %203 = vadd.xlane.f32.xlu0 %v199
    %v204 = vpop.xlane.xlu0 %203
    %v205 = vmul.f32 %v202, 0.03125
    %v206 = vmul.f32 %v204, 0.03125
    %v207 = vmul.f32 %v196, %v196
    %v208 = vmul.f32 %v199, %v199
    %209 = vadd.xlane.f32.xlu0 %v207
    %v210 = vpop.xlane.xlu0 %209
    %211 = vadd.xlane.f32.xlu0 %v208
    %v212 = vpop.xlane.xlu0 %211
    %v213 = vmul.f32 %v210, 0.03125
    %v214 = vmul.f32 %v212, 0.03125
    %v215 = vmul.f32 %v205, %v205
    %v216 = vmul.f32 %v206, %v206
    %v217 = vsub.f32 %v213, %v215
    %v218 = vsub.f32 %v214, %v216
    %v219 = vmax.f32 %v217, 0.0
    %v220 = vmax.f32 %v218, 0.0
    %v221 = vsub.f32 %v196, %v205
    %v222 = vsub.f32 %v199, %v206
    %v223 = vadd.f32 %v219, 1e-05
    %v224 = vadd.f32 %v220, 1e-05
    %v225 = vrsqrt.pop %v223
    %v226 = vmul.f32 %v225, %v223
    %v227 = vmul.f32 %v226, %v225
    %v228 = vmul.f32 0.5, %v227
    %v229 = vsub.f32 1.5, %v228
    %v230 = vmul.f32 %v225, %v229
    %vm231 = vweird.f32 %v223
    %vm232 = vweird.f32 %v225
    %vm233 = vmor %vm231, %vm232
    %v234 = vsel %vm233, %v225, %v230
    %v235 = vrsqrt.pop %v224
    %v236 = vmul.f32 %v235, %v224
    %v237 = vmul.f32 %v236, %v235
    %v238 = vmul.f32 0.5, %v237
    %v239 = vsub.f32 1.5, %v238
    %v240 = vmul.f32 %v235, %v239
    %vm241 = vweird.f32 %v224
    %vm242 = vweird.f32 %v235
    %vm243 = vmor %vm241, %vm242
    %v244 = vsel %vm243, %v235, %v240
    %v245 = vmul.f32 %v221, %v234
    %v246 = vmul.f32 %v222, %v244
    %v247 = vld [vmem:[%s3] sm:$0x1]
    %v249 = vperm.slane %v247, 0
    %v251 = vmul.f32 %v245, %v249
    %v252 = vmul.f32 %v246, %v249
    %v253 = vld [vmem:[%s4] sm:$0x1]
    %v255 = vperm.slane %v253, 0
    %v257 = vadd.f32 %v251, %v255
    %v258 = vadd.f32 %v252, %v255
    %v259 = vmax.f32 %v257, 0.0
    %v260 = vmax.f32 %v258, 0.0
    %v261 = vld [vmem:[#allocation8] sm:$0xff]
    %v262 = vld [vmem:[#allocation8 + $0x8] sm:$0xff]
    %v263 = vld [vmem:[#allocation8 + $0x10] sm:$0xff]
    %v264 = vld [vmem:[#allocation8 + $0x18] sm:$0xff]
    %v265 = vld [vmem:[#allocation8 + $0x20] sm:$0xff]
    %v266 = vld [vmem:[#allocation8 + $0x28] sm:$0xff]
    %v267 = vld [vmem:[#allocation8 + $0x30] sm:$0xff]
    %v268 = vld [vmem:[#allocation8 + $0x38] sm:$0xff]
    %v269 = vld [vmem:[#allocation8 + $0x40] sm:$0xff]
    %v270 = vld [vmem:[#allocation8 + $0x48] sm:$0xff]
    %v271 = vld [vmem:[#allocation8 + $0x50] sm:$0xff]
    %v272 = vld [vmem:[#allocation8 + $0x58] sm:$0xff]
    %v273 = vld [vmem:[#allocation8 + $0x60] sm:$0xff]
    %v274 = vld [vmem:[#allocation8 + $0x68] sm:$0xff]
    %v275 = vld [vmem:[#allocation8 + $0x70] sm:$0xff]
    %v276 = vld [vmem:[#allocation8 + $0x78] sm:$0xff]
    %v277 = vld [vmem:[%s6] sm:$0x1]
    %v279 = vperm.slane %v277, 0
    %281 = vmatpush.msra.mxu0 %v276
    %282 = vmatpush.msra.mxu0 %v275
    %283 = vmatpush.msra.mxu0 %v274
    %284 = vmatpush.msra.mxu0 %v273
    %285 = vmatpush.msra.mxu0 %v272
    %286 = vmatpush.msra.mxu0 %v271
    %287 = vmatpush.msra.mxu0 %v270
    %288 = vmatpush.msra.mxu0 %v269
    %289 = vmatpush.msra.mxu0 %v268
    %290 = vmatpush.msra.mxu0 %v267
    %291 = vmatpush.msra.mxu0 %v266
    %292 = vmatpush.msra.mxu0 %v265
    %293 = vmatpush.msra.mxu0 %v264
    %294 = vmatpush.msra.mxu0 %v263
    %295 = vmatpush.msra.mxu0 %v262
    %296 = vmatpush.msra.mxu0 %v261
    %297 = vmatmul.f32.gmra.mxu0 %v259
    %v298 = vpop.f32.mrf.mxu0
    %v299 = vadd.f32 %v279, %v298
    %300 = vmatmul.f32.gmra.mxu0 %v260
    %v301 = vpop.f32.mrf.mxu0
    %v302 = vadd.f32 %v279, %v301
    %303 = vdwg.mxu0
    %304 = vadd.xlane.f32.xlu0 %v299
    %v305 = vpop.xlane.xlu0 %304
    %306 = vadd.xlane.f32.xlu0 %v302
    %v307 = vpop.xlane.xlu0 %306
    %v308 = vmul.f32 %v305, 0.03125
    %v309 = vmul.f32 %v307, 0.03125
    %v310 = vmul.f32 %v299, %v299
    %v311 = vmul.f32 %v302, %v302
    %312 = vadd.xlane.f32.xlu0 %v310
    %v313 = vpop.xlane.xlu0 %312
    %314 = vadd.xlane.f32.xlu0 %v311
    %v315 = vpop.xlane.xlu0 %314
    %v316 = vmul.f32 %v313, 0.03125
    %v317 = vmul.f32 %v315, 0.03125
    %v318 = vmul.f32 %v308, %v308
    %v319 = vmul.f32 %v309, %v309
    %v320 = vsub.f32 %v316, %v318
    %v321 = vsub.f32 %v317, %v319
    %v322 = vmax.f32 %v320, 0.0
    %v323 = vmax.f32 %v321, 0.0
    %v324 = vsub.f32 %v299, %v308
    %v325 = vsub.f32 %v302, %v309
    %v326 = vadd.f32 %v322, 1e-05
    %v327 = vadd.f32 %v323, 1e-05
    %v328 = vrsqrt.pop %v326
    %v329 = vmul.f32 %v328, %v326
    %v330 = vmul.f32 %v329, %v328
    %v331 = vmul.f32 0.5, %v330
    %v332 = vsub.f32 1.5, %v331
    %v333 = vmul.f32 %v328, %v332
    %vm334 = vweird.f32 %v326
    %vm335 = vweird.f32 %v328
    %vm336 = vmor %vm334, %vm335
    %v337 = vsel %vm336, %v328, %v333
    %v338 = vrsqrt.pop %v327
    %v339 = vmul.f32 %v338, %v327
    %v340 = vmul.f32 %v339, %v338
    %v341 = vmul.f32 0.5, %v340
    %v342 = vsub.f32 1.5, %v341
    %v343 = vmul.f32 %v338, %v342
    %vm344 = vweird.f32 %v327
    %vm345 = vweird.f32 %v338
    %vm346 = vmor %vm344, %vm345
    %v347 = vsel %vm346, %v338, %v343
    %v348 = vmul.f32 %v324, %v337
    %v349 = vmul.f32 %v325, %v347
    %v350 = vld [vmem:[%s7] sm:$0x1]
    %v352 = vperm.slane %v350, 0
    %v354 = vmul.f32 %v348, %v352
    %v355 = vmul.f32 %v349, %v352
    %v356 = vld [vmem:[%s8] sm:$0x1]
    %v358 = vperm.slane %v356, 0
    %v360 = vadd.f32 %v354, %v358
    %v361 = vadd.f32 %v355, %v358
    %v362 = vmax.f32 %v360, 0.0
    %v363 = vmax.f32 %v361, 0.0
    %v364 = vadd.f32 %v362, %v173
    %v365 = vadd.f32 %v363, %v176
    %v366 = vld [vmem:[#allocation10] sm:$0xff]
    %v367 = vld [vmem:[#allocation10 + $0x8] sm:$0xff]
    %v368 = vld [vmem:[#allocation10 + $0x10] sm:$0xff]
    %v369 = vld [vmem:[#allocation10 + $0x18] sm:$0xff]
    %v370 = vld [vmem:[#allocation10 + $0x20] sm:$0xff]
    %v371 = vld [vmem:[#allocation10 + $0x28] sm:$0xff]
    %v372 = vld [vmem:[#allocation10 + $0x30] sm:$0xff]
    %v373 = vld [vmem:[#allocation10 + $0x38] sm:$0xff]
    %v374 = vld [vmem:[#allocation10 + $0x40] sm:$0xff]
    %v375 = vld [vmem:[#allocation10 + $0x48] sm:$0xff]
    %v376 = vld [vmem:[#allocation10 + $0x50] sm:$0xff]
    %v377 = vld [vmem:[#allocation10 + $0x58] sm:$0xff]
    %v378 = vld [vmem:[#allocation10 + $0x60] sm:$0xff]
    %v379 = vld [vmem:[#allocation10 + $0x68] sm:$0xff]
    %v380 = vld [vmem:[#allocation10 + $0x70] sm:$0xff]
    %v381 = vld [vmem:[#allocation10 + $0x78] sm:$0xff]
    %v382 = vld [vmem:[%s10] sm:$0x1]
    %v384 = vperm.slane %v382, 0
    %386 = vmatpush.msra.mxu0 %v381
    %387 = vmatpush.msra.mxu0 %v380
    %388 = vmatpush.msra.mxu0 %v379
    %389 = vmatpush.msra.mxu0 %v378
    %390 = vmatpush.msra.mxu0 %v377
    %391 = vmatpush.msra.mxu0 %v376
    %392 = vmatpush.msra.mxu0 %v375
    %393 = vmatpush.msra.mxu0 %v374
    %394 = vmatpush.msra.mxu0 %v373
    %395 = vmatpush.msra.mxu0 %v372
    %396 = vmatpush.msra.mxu0 %v371
    %397 = vmatpush.msra.mxu0 %v370
    %398 = vmatpush.msra.mxu0 %v369
    %399 = vmatpush.msra.mxu0 %v368
    %400 = vmatpush.msra.mxu0 %v367
    %401 = vmatpush.msra.mxu0 %v366
    %402 = vmatmul.f32.gmra.mxu0 %v364
    %v403 = vpop.f32.mrf.mxu0
    %v404 = vadd.f32 %v384, %v403
    %405 = vmatmul.f32.gmra.mxu0 %v365
    %v406 = vpop.f32.mrf.mxu0
    %v407 = vadd.f32 %v384, %v406
    %408 = vdwg.mxu0
    %v409 = vxor.u32 %v404, 2147483648
    %v410 = vxor.u32 %v407, 2147483648
    %v411 = vmul.f32 %v409, 1.442695
    %v412 = vpow.pop %v411
    %v413 = vmul.f32 %v410, 1.442695
    %v414 = vpow.pop %v413
    %v415 = vadd.f32 %v412, 1.0
    %v416 = vadd.f32 %v414, 1.0
    %v417 = vrcp.pop %v415
    %v418 = vmul.f32 %v415, %v417
    %v419 = vsub.f32 1.0, %v418
    %v420 = vmul.f32 %v417, %v419
    %v421 = vadd.f32 %v417, %v420
    %vm422 = vweird.f32 %v415
    %vm423 = vweird.f32 %v417
    %vm424 = vmor %vm422, %vm423
    %v425 = vsel %vm424, %v417, %v421
    %v426 = vand.u32 2147483647, %v415
    %vm427 = vcmp.eq.f32.partialorder %v426, 8.507059e+37
    %v428 = vand.u32 %v415, 2147483648
    %v429 = vor.u32 1.1754944e-38, %v428
    %v430 = vsel %vm427, %v429, %v425
    %v431 = vmul.f32 1.0, %v430
    %v432 = vrcp.pop %v416
    %v433 = vmul.f32 %v416, %v432
    %v434 = vsub.f32 1.0, %v433
    %v435 = vmul.f32 %v432, %v434
    %v436 = vadd.f32 %v432, %v435
    %vm437 = vweird.f32 %v416
    %vm438 = vweird.f32 %v432
    %vm439 = vmor %vm437, %vm438
    %v440 = vsel %vm439, %v432, %v436
    %v441 = vand.u32 2147483647, %v416
    %vm442 = vcmp.eq.f32.partialorder %v441, 8.507059e+37
    %v443 = vand.u32 %v416, 2147483648
    %v444 = vor.u32 1.1754944e-38, %v443
    %v445 = vsel %vm442, %v444, %v440
    %v446 = vmul.f32 1.0, %v445
    %v447 = vpack.c.bf16 %v431, %v431
    %v448 = vpack.c.bf16 %v446, %v446
    %449 = vst [vmem:[#allocation11] sm:$0xf] %v447
    %450 = vst [vmem:[#allocation11 + $0x4] sm:$0xf] %v448
    // Predicated region
    $region66: #{tpu_custom_call.1} parent=1 // pred_check
      _
    $region67: #{tpu_custom_call.1} parent=1 // pred_check_branch
      %452 = sbr.rel (0) target = $region69
    $region68: #{tpu_custom_call.1} parent=1 // pred_region
      %454 = vsyncadd [#allocation4], 0
      %s455 = sshll.u32 [#allocation11], 4
      %s456 = int_to_ptr.vmem [resolvable:$true] %s455
      %s457 = sshll.u32 %s11, 4
      %s458 = int_to_ptr.hbm [resolvable:$true] %s457
      %463 = dma.vmem_to_hbm [thread:$0]  %s456, 128, %s458, [#allocation4], 64, 64, 4
    $region69: #{tpu_custom_call.1} parent=1 // pred_fallthru
      _
    // Predicated region
    $region70: #{tpu_custom_call.1} parent=1 // pred_check
      _
    $region71: #{tpu_custom_call.1} parent=1 // pred_check_branch
      %465 = sbr.rel (0) target = $region73
    $region72: #{tpu_custom_call.1} parent=1 // pred_region
      %467 = dma.done [#allocation4], 128
    $region73: #{tpu_custom_call.1} parent=1 // pred_fallthru
      _
    %468 = vsyncpa [#allocation3], 1
    %469 = vsyncpa [#allocation6], 1
    %470 = vsyncpa [#allocation9], 1
    %471 = vsyncpa [#allocation4], 1

// kernel: tpu_custom_call.1
$region0: #{tpu_custom_call.1}
  #allocation0 [shape = 'u32[]', space=smem, size = 0x4, offset = 0x4, fixed_abs, tag = 'smem constant byte address 0x4 - core index']
  #allocation1 [shape = 'u32[72,128]{1,0:T(1,128)}', space=vmem, size = 0x9000, scoped, tag = 'internal scratch']
  %s0 = inlined_call_operand.hbm [shape: f32[16,128], index: 0, kind: input, shape index: {}]
  %s1 = inlined_call_operand.hbm [shape: f32[128,256], index: 1, kind: input, shape index: {}]
  %s2 = inlined_call_operand.hbm [shape: f32[1,256], index: 2, kind: input, shape index: {}]
  %s3 = inlined_call_operand.vmem [shape: f32[1,128], index: 3, kind: input, shape index: {}]
  %s4 = inlined_call_operand.vmem [shape: f32[1,128], index: 4, kind: input, shape index: {}]
  %s5 = inlined_call_operand.hbm [shape: f32[128,128], index: 5, kind: input, shape index: {}]
  %s6 = inlined_call_operand.vmem [shape: f32[1,128], index: 6, kind: input, shape index: {}]
  %s7 = inlined_call_operand.vmem [shape: f32[1,128], index: 7, kind: input, shape index: {}]
  %s8 = inlined_call_operand.vmem [shape: f32[1,128], index: 8, kind: input, shape index: {}]
  %s9 = inlined_call_operand.hbm [shape: f32[128,128], index: 9, kind: input, shape index: {}]
  %s10 = inlined_call_operand.vmem [shape: f32[1,128], index: 10, kind: input, shape index: {}]
  %s11 = inlined_call_operand.hbm [shape: bf16[16,128], index: 11, kind: output, shape index: {}]
  %s12 = sld [smem:[#allocation0]]
  $region74: #{tpu_custom_call.1} parent=0
    _
  %s14 = ssub.s32 1, %s12
  %s15 = scalar_select 0, %s14, %s12
  $region1: #{tpu_custom_call.1} parent=0
    #allocation2 [shape = 'u8[8192]{0}', space=vmem, size = 0x2000, scoped, tag = 'input window, operand 0, single buffered']
    #allocation3 [shape = 's32[1]{0}', space=sflag, size = 0x4, scoped, tag = 'scoped memory for tpu_custom_call.1']
    #allocation4 [shape = 's32[1]{0}', space=sflag, size = 0x4, scoped, tag = 'scoped memory for tpu_custom_call.1']
    #allocation5 [shape = 'u8[131072]{0}', space=vmem, size = 0x20000, scoped, tag = 'input window, operand 1, single buffered']
    #allocation6 [shape = 's32[1]{0}', space=sflag, size = 0x4, scoped, tag = 'scoped memory for tpu_custom_call.1']
    #allocation7 [shape = 'u8[1024]{0}', space=vmem, size = 0x400, scoped, tag = 'input window, operand 2, single buffered']
    #allocation8 [shape = 'u8[65536]{0}', space=vmem, size = 0x10000, scoped, tag = 'input window, operand 5, single buffered']
    #allocation9 [shape = 's32[1]{0}', space=sflag, size = 0x4, scoped, tag = 'scoped memory for tpu_custom_call.1']
    #allocation10 [shape = 'u8[65536]{0}', space=vmem, size = 0x10000, scoped, tag = 'input window, operand 9, single buffered']
    #allocation11 [shape = 'u8[4096]{0}', space=vmem, size = 0x1000, scoped, tag = 'output window, operand 0, single buffered']
    %16 = vsyncpa [#allocation3], 0
    %17 = vsyncpa [#allocation6], 0
    %18 = vsyncpa [#allocation9], 0
    %19 = vsyncpa [#allocation4], 0
    // Predicated region
    $region2: #{tpu_custom_call.1} parent=1 // pred_check
      _
    $region3: #{tpu_custom_call.1} parent=1 // pred_check_branch
      %21 = sbr.rel (0) target = $region5
    $region4: #{tpu_custom_call.1} parent=1 // pred_region
      %23 = vsyncadd [#allocation3], 0
      %s24 = sshll.u32 %s0, 4
      %s25 = int_to_ptr.hbm [resolvable:$true] %s24
      %s26 = sshll.u32 [#allocation2], 4
      %s27 = int_to_ptr.vmem [resolvable:$true] %s26
      %32 = dma.hbm_to_vmem [thread:$0]  %s25, 256, %s27, [#allocation3], 128, 128, 8
    $region5: #{tpu_custom_call.1} parent=1 // pred_fallthru
      _
    // Predicated region
    $region6: #{tpu_custom_call.1} parent=1 // pred_check
      _
    $region7: #{tpu_custom_call.1} parent=1 // pred_check_branch
      %34 = sbr.rel (0) target = $region9
    $region8: #{tpu_custom_call.1} parent=1 // pred_region
      %36 = vsyncadd [#allocation6], 0
      %s37 = sshll.u32 %s1, 4
      %s38 = int_to_ptr.hbm [resolvable:$true] %s37
      %s39 = sshll.u32 [#allocation5], 4
      %s40 = int_to_ptr.vmem [resolvable:$true] %s39
      %45 = dma.hbm_to_vmem [thread:$0]  %s38, 4096, %s40, [#allocation6], 256, 256, 16
    $region9: #{tpu_custom_call.1} parent=1 // pred_fallthru
      _
    // Predicated region
    $region10: #{tpu_custom_call.1} parent=1 // pred_check
      _
    $region11: #{tpu_custom_call.1} parent=1 // pred_check_branch
      %47 = sbr.rel (0) target = $region13
    $region12: #{tpu_custom_call.1} parent=1 // pred_region
      %49 = vsyncadd [#allocation6], 0
      %s51 = sshll.u32 %s2, 4
      %s52 = int_to_ptr.hbm [resolvable:$true] %s51
      %s53 = sshll.u32 [#allocation7], 4
      %s54 = int_to_ptr.vmem [resolvable:$true] %s53
      %56 = dma.hbm_to_vmem [thread:$0]  %s52, 32, %s54, [#allocation6]
    $region13: #{tpu_custom_call.1} parent=1 // pred_fallthru
      _
    // Predicated region
    $region14: #{tpu_custom_call.1} parent=1 // pred_check
      _
    $region15: #{tpu_custom_call.1} parent=1 // pred_check_branch
      %58 = sbr.rel (0) target = $region17
    $region16: #{tpu_custom_call.1} parent=1 // pred_region
      _
    $region17: #{tpu_custom_call.1} parent=1 // pred_fallthru
      _
    // Predicated region
    $region18: #{tpu_custom_call.1} parent=1 // pred_check
      _
    $region19: #{tpu_custom_call.1} parent=1 // pred_check_branch
      %60 = sbr.rel (0) target = $region21
    $region20: #{tpu_custom_call.1} parent=1 // pred_region
      _
    $region21: #{tpu_custom_call.1} parent=1 // pred_fallthru
      _
    // Predicated region
    $region22: #{tpu_custom_call.1} parent=1 // pred_check
      _
    $region23: #{tpu_custom_call.1} parent=1 // pred_check_branch
      %62 = sbr.rel (0) target = $region25
    $region24: #{tpu_custom_call.1} parent=1 // pred_region
      %64 = vsyncadd [#allocation9], 0
      %s65 = sshll.u32 %s5, 4
      %s66 = int_to_ptr.hbm [resolvable:$true] %s65
      %s67 = sshll.u32 [#allocation8], 4
      %s68 = int_to_ptr.vmem [resolvable:$true] %s67
      %73 = dma.hbm_to_vmem [thread:$0]  %s66, 2048, %s68, [#allocation9], 128, 128, 8
    $region25: #{tpu_custom_call.1} parent=1 // pred_fallthru
      _
    // Predicated region
    $region26: #{tpu_custom_call.1} parent=1 // pred_check
      _
    $region27: #{tpu_custom_call.1} parent=1 // pred_check_branch
      %75 = sbr.rel (0) target = $region29
    $region28: #{tpu_custom_call.1} parent=1 // pred_region
      _
    $region29: #{tpu_custom_call.1} parent=1 // pred_fallthru
      _
    // Predicated region
    $region30: #{tpu_custom_call.1} parent=1 // pred_check
      _
    $region31: #{tpu_custom_call.1} parent=1 // pred_check_branch
      %77 = sbr.rel (0) target = $region33
    $region32: #{tpu_custom_call.1} parent=1 // pred_region
      _
    $region33: #{tpu_custom_call.1} parent=1 // pred_fallthru
      _
    // Predicated region
    $region34: #{tpu_custom_call.1} parent=1 // pred_check
      _
    $region35: #{tpu_custom_call.1} parent=1 // pred_check_branch
      %79 = sbr.rel (0) target = $region37
    $region36: #{tpu_custom_call.1} parent=1 // pred_region
      _
    $region37: #{tpu_custom_call.1} parent=1 // pred_fallthru
      _
    // Predicated region
    $region38: #{tpu_custom_call.1} parent=1 // pred_check
      _
    $region39: #{tpu_custom_call.1} parent=1 // pred_check_branch
      %81 = sbr.rel (0) target = $region41
    $region40: #{tpu_custom_call.1} parent=1 // pred_region
      %83 = vsyncadd [#allocation9], 0
      %s84 = sshll.u32 %s9, 4
      %s85 = int_to_ptr.hbm [resolvable:$true] %s84
      %s86 = sshll.u32 [#allocation10], 4
      %s87 = int_to_ptr.vmem [resolvable:$true] %s86
      %92 = dma.hbm_to_vmem [thread:$0]  %s85, 2048, %s87, [#allocation9], 128, 128, 8
    $region41: #{tpu_custom_call.1} parent=1 // pred_fallthru
      _
    // Predicated region
    $region42: #{tpu_custom_call.1} parent=1 // pred_check
      _
    $region43: #{tpu_custom_call.1} parent=1 // pred_check_branch
      %94 = sbr.rel (0) target = $region45
    $region44: #{tpu_custom_call.1} parent=1 // pred_region
      _
    $region45: #{tpu_custom_call.1} parent=1 // pred_fallthru
      _
    // Predicated region
    $region46: #{tpu_custom_call.1} parent=1 // pred_check
      _
    $region47: #{tpu_custom_call.1} parent=1 // pred_check_branch
      %96 = sbr.rel (0) target = $region49
    $region48: #{tpu_custom_call.1} parent=1 // pred_region
      %98 = dma.done [#allocation3], 256
    $region49: #{tpu_custom_call.1} parent=1 // pred_fallthru
      _
    // Predicated region
    $region50: #{tpu_custom_call.1} parent=1 // pred_check
      _
    $region51: #{tpu_custom_call.1} parent=1 // pred_check_branch
      %100 = sbr.rel (0) target = $region53
    $region52: #{tpu_custom_call.1} parent=1 // pred_region
      %102 = dma.done [#allocation6], 4096
    $region53: #{tpu_custom_call.1} parent=1 // pred_fallthru
      _
    // Predicated region
    $region54: #{tpu_custom_call.1} parent=1 // pred_check
      _
    $region55: #{tpu_custom_call.1} parent=1 // pred_check_branch
      %104 = sbr.rel (0) target = $region57
    $region56: #{tpu_custom_call.1} parent=1 // pred_region
      %106 = dma.done [#allocation6], 32
    $region57: #{tpu_custom_call.1} parent=1 // pred_fallthru
      _
    // Predicated region
    $region58: #{tpu_custom_call.1} parent=1 // pred_check
      _
    $region59: #{tpu_custom_call.1} parent=1 // pred_check_branch
      %108 = sbr.rel (0) target = $region61
    $region60: #{tpu_custom_call.1} parent=1 // pred_region
      %110 = dma.done [#allocation9], 2048
    $region61: #{tpu_custom_call.1} parent=1 // pred_fallthru
      _
    // Predicated region
    $region62: #{tpu_custom_call.1} parent=1 // pred_check
      _
    $region63: #{tpu_custom_call.1} parent=1 // pred_check_branch
      %112 = sbr.rel (0) target = $region65
    $region64: #{tpu_custom_call.1} parent=1 // pred_region
      %114 = dma.done [#allocation9], 2048
    $region65: #{tpu_custom_call.1} parent=1 // pred_fallthru
      _
    %v115 = vld [vmem:[#allocation2] sm:$0xff]
    %v116 = vld [vmem:[#allocation2 + $0x8] sm:$0xff]
    %v117 = vld [vmem:[#allocation5] sm:$0xff]
    %v118 = vld [vmem:[#allocation5 + $0x8] sm:$0xff]
    %v119 = vld [vmem:[#allocation5 + $0x10] sm:$0xff]
    %v120 = vld [vmem:[#allocation5 + $0x18] sm:$0xff]
    %v121 = vld [vmem:[#allocation5 + $0x20] sm:$0xff]
    %v122 = vld [vmem:[#allocation5 + $0x28] sm:$0xff]
    %v123 = vld [vmem:[#allocation5 + $0x30] sm:$0xff]
    %v124 = vld [vmem:[#allocation5 + $0x38] sm:$0xff]
    %v125 = vld [vmem:[#allocation5 + $0x40] sm:$0xff]
    %v126 = vld [vmem:[#allocation5 + $0x48] sm:$0xff]
    %v127 = vld [vmem:[#allocation5 + $0x50] sm:$0xff]
    %v128 = vld [vmem:[#allocation5 + $0x58] sm:$0xff]
    %v129 = vld [vmem:[#allocation5 + $0x60] sm:$0xff]
    %v130 = vld [vmem:[#allocation5 + $0x68] sm:$0xff]
    %v131 = vld [vmem:[#allocation5 + $0x70] sm:$0xff]
    %v132 = vld [vmem:[#allocation5 + $0x78] sm:$0xff]
    %v133 = vld [vmem:[#allocation5 + $0x80] sm:$0xff]
    %v134 = vld [vmem:[#allocation5 + $0x88] sm:$0xff]
    %v135 = vld [vmem:[#allocation5 + $0x90] sm:$0xff]
    %v136 = vld [vmem:[#allocation5 + $0x98] sm:$0xff]
    %v137 = vld [vmem:[#allocation5 + $0xa0] sm:$0xff]
    %v138 = vld [vmem:[#allocation5 + $0xa8] sm:$0xff]
    %v139 = vld [vmem:[#allocation5 + $0xb0] sm:$0xff]
    %v140 = vld [vmem:[#allocation5 + $0xb8] sm:$0xff]
    %v141 = vld [vmem:[#allocation5 + $0xc0] sm:$0xff]
    %v142 = vld [vmem:[#allocation5 + $0xc8] sm:$0xff]
    %v143 = vld [vmem:[#allocation5 + $0xd0] sm:$0xff]
    %v144 = vld [vmem:[#allocation5 + $0xd8] sm:$0xff]
    %v145 = vld [vmem:[#allocation5 + $0xe0] sm:$0xff]
    %v146 = vld [vmem:[#allocation5 + $0xe8] sm:$0xff]
    %v147 = vld [vmem:[#allocation5 + $0xf0] sm:$0xff]
    %v148 = vld [vmem:[#allocation5 + $0xf8] sm:$0xff]
    %v149 = vld [vmem:[#allocation7] sm:$0x3]
    %v151 = vperm.slane %v149, 0
    %v152 = vperm.slane %v149, 1
    %155 = vmatpush.msra.mxu0 %v147
    %156 = vmatpush.msra.mxu0 %v145
    %157 = vmatpush.msra.mxu0 %v143
    %158 = vmatpush.msra.mxu0 %v141
    %159 = vmatpush.msra.mxu0 %v139
    %160 = vmatpush.msra.mxu0 %v137
    %161 = vmatpush.msra.mxu0 %v135
    %162 = vmatpush.msra.mxu0 %v133
    %163 = vmatpush.msra.mxu0 %v131
    %164 = vmatpush.msra.mxu0 %v129
    %165 = vmatpush.msra.mxu0 %v127
    %166 = vmatpush.msra.mxu0 %v125
    %167 = vmatpush.msra.mxu0 %v123
    %168 = vmatpush.msra.mxu0 %v121
    %169 = vmatpush.msra.mxu0 %v119
    %170 = vmatpush.msra.mxu0 %v117
    %171 = vmatmul.f32.gmra.mxu0 %v115
    %v172 = vpop.f32.mrf.mxu0
    %v173 = vadd.f32 %v151, %v172
    %174 = vmatmul.f32.gmra.mxu0 %v116
    %v175 = vpop.f32.mrf.mxu0
    %v176 = vadd.f32 %v151, %v175
    %177 = vdwg.mxu0
    %178 = vmatpush.msra.mxu0 %v148
    %179 = vmatpush.msra.mxu0 %v146
    %180 = vmatpush.msra.mxu0 %v144
    %181 = vmatpush.msra.mxu0 %v142
    %182 = vmatpush.msra.mxu0 %v140
    %183 = vmatpush.msra.mxu0 %v138
    %184 = vmatpush.msra.mxu0 %v136
    %185 = vmatpush.msra.mxu0 %v134
    %186 = vmatpush.msra.mxu0 %v132
    %187 = vmatpush.msra.mxu0 %v130
    %188 = vmatpush.msra.mxu0 %v128
    %189 = vmatpush.msra.mxu0 %v126
    %190 = vmatpush.msra.mxu0 %v124
    %191 = vmatpush.msra.mxu0 %v122
    %192 = vmatpush.msra.mxu0 %v120
    %193 = vmatpush.msra.mxu0 %v118
    %194 = vmatmul.f32.gmra.mxu0 %v115
    %v195 = vpop.f32.mrf.mxu0
    %v196 = vadd.f32 %v152, %v195
    %197 = vmatmul.f32.gmra.mxu0 %v116
    %v198 = vpop.f32.mrf.mxu0
    %v199 = vadd.f32 %v152, %v198
    %200 = vdwg.mxu0
    %201 = vadd.xlane.f32.xlu0 %v196
    %v202 = vpop.xlane.xlu0 %201
    %203 = vadd.xlane.f32.xlu0 %v199
    %v204 = vpop.xlane.xlu0 %203
    %v205 = vmul.f32 %v202, 0.03125
    %v206 = vmul.f32 %v204, 0.03125
    %v207 = vmul.f32 %v196, %v196
    %v208 = vmul.f32 %v199, %v199
    %209 = vadd.xlane.f32.xlu0 %v207
    %v210 = vpop.xlane.xlu0 %209
    %211 = vadd.xlane.f32.xlu0 %v208
    %v212 = vpop.xlane.xlu0 %211
    %v213 = vmul.f32 %v210, 0.03125
    %v214 = vmul.f32 %v212, 0.03125
    %v215 = vmul.f32 %v205, %v205
    %v216 = vmul.f32 %v206, %v206
    %v217 = vsub.f32 %v213, %v215
    %v218 = vsub.f32 %v214, %v216
    %v219 = vmax.f32 %v217, 0.0
    %v220 = vmax.f32 %v218, 0.0
    %v221 = vsub.f32 %v196, %v205
    %v222 = vsub.f32 %v199, %v206
    %v223 = vadd.f32 %v219, 1e-05
    %v224 = vadd.f32 %v220, 1e-05
    %v225 = vrsqrt.pop %v223
    %v226 = vmul.f32 %v225, %v223
    %v227 = vmul.f32 %v226, %v225
    %v228 = vmul.f32 0.5, %v227
    %v229 = vsub.f32 1.5, %v228
    %v230 = vmul.f32 %v225, %v229
    %vm231 = vweird.f32 %v223
    %vm232 = vweird.f32 %v225
    %vm233 = vmor %vm231, %vm232
    %v234 = vsel %vm233, %v225, %v230
    %v235 = vrsqrt.pop %v224
    %v236 = vmul.f32 %v235, %v224
    %v237 = vmul.f32 %v236, %v235
    %v238 = vmul.f32 0.5, %v237
    %v239 = vsub.f32 1.5, %v238
    %v240 = vmul.f32 %v235, %v239
    %vm241 = vweird.f32 %v224
    %vm242 = vweird.f32 %v235
    %vm243 = vmor %vm241, %vm242
    %v244 = vsel %vm243, %v235, %v240
    %v245 = vmul.f32 %v221, %v234
    %v246 = vmul.f32 %v222, %v244
    %v247 = vld [vmem:[%s3] sm:$0x1]
    %v249 = vperm.slane %v247, 0
    %v251 = vmul.f32 %v245, %v249
    %v252 = vmul.f32 %v246, %v249
    %v253 = vld [vmem:[%s4] sm:$0x1]
    %v255 = vperm.slane %v253, 0
    %v257 = vadd.f32 %v251, %v255
    %v258 = vadd.f32 %v252, %v255
    %v259 = vmax.f32 %v257, 0.0
    %v260 = vmax.f32 %v258, 0.0
    %v261 = vld [vmem:[#allocation8] sm:$0xff]
    %v262 = vld [vmem:[#allocation8 + $0x8] sm:$0xff]
    %v263 = vld [vmem:[#allocation8 + $0x10] sm:$0xff]
    %v264 = vld [vmem:[#allocation8 + $0x18] sm:$0xff]
    %v265 = vld [vmem:[#allocation8 + $0x20] sm:$0xff]
    %v266 = vld [vmem:[#allocation8 + $0x28] sm:$0xff]
    %v267 = vld [vmem:[#allocation8 + $0x30] sm:$0xff]
    %v268 = vld [vmem:[#allocation8 + $0x38] sm:$0xff]
    %v269 = vld [vmem:[#allocation8 + $0x40] sm:$0xff]
    %v270 = vld [vmem:[#allocation8 + $0x48] sm:$0xff]
    %v271 = vld [vmem:[#allocation8 + $0x50] sm:$0xff]
    %v272 = vld [vmem:[#allocation8 + $0x58] sm:$0xff]
    %v273 = vld [vmem:[#allocation8 + $0x60] sm:$0xff]
    %v274 = vld [vmem:[#allocation8 + $0x68] sm:$0xff]
    %v275 = vld [vmem:[#allocation8 + $0x70] sm:$0xff]
    %v276 = vld [vmem:[#allocation8 + $0x78] sm:$0xff]
    %v277 = vld [vmem:[%s6] sm:$0x1]
    %v279 = vperm.slane %v277, 0
    %281 = vmatpush.msra.mxu0 %v276
    %282 = vmatpush.msra.mxu0 %v275
    %283 = vmatpush.msra.mxu0 %v274
    %284 = vmatpush.msra.mxu0 %v273
    %285 = vmatpush.msra.mxu0 %v272
    %286 = vmatpush.msra.mxu0 %v271
    %287 = vmatpush.msra.mxu0 %v270
    %288 = vmatpush.msra.mxu0 %v269
    %289 = vmatpush.msra.mxu0 %v268
    %290 = vmatpush.msra.mxu0 %v267
    %291 = vmatpush.msra.mxu0 %v266
    %292 = vmatpush.msra.mxu0 %v265
    %293 = vmatpush.msra.mxu0 %v264
    %294 = vmatpush.msra.mxu0 %v263
    %295 = vmatpush.msra.mxu0 %v262
    %296 = vmatpush.msra.mxu0 %v261
    %297 = vmatmul.f32.gmra.mxu0 %v259
    %v298 = vpop.f32.mrf.mxu0
    %v299 = vadd.f32 %v279, %v298
    %300 = vmatmul.f32.gmra.mxu0 %v260
    %v301 = vpop.f32.mrf.mxu0
    %v302 = vadd.f32 %v279, %v301
    %303 = vdwg.mxu0
    %304 = vadd.xlane.f32.xlu0 %v299
    %v305 = vpop.xlane.xlu0 %304
    %306 = vadd.xlane.f32.xlu0 %v302
    %v307 = vpop.xlane.xlu0 %306
    %v308 = vmul.f32 %v305, 0.03125
    %v309 = vmul.f32 %v307, 0.03125
    %v310 = vmul.f32 %v299, %v299
    %v311 = vmul.f32 %v302, %v302
    %312 = vadd.xlane.f32.xlu0 %v310
    %v313 = vpop.xlane.xlu0 %312
    %314 = vadd.xlane.f32.xlu0 %v311
    %v315 = vpop.xlane.xlu0 %314
    %v316 = vmul.f32 %v313, 0.03125
    %v317 = vmul.f32 %v315, 0.03125
    %v318 = vmul.f32 %v308, %v308
    %v319 = vmul.f32 %v309, %v309
    %v320 = vsub.f32 %v316, %v318
    %v321 = vsub.f32 %v317, %v319
    %v322 = vmax.f32 %v320, 0.0
    %v323 = vmax.f32 %v321, 0.0
    %v324 = vsub.f32 %v299, %v308
    %v325 = vsub.f32 %v302, %v309
    %v326 = vadd.f32 %v322, 1e-05
    %v327 = vadd.f32 %v323, 1e-05
    %v328 = vrsqrt.pop %v326
    %v329 = vmul.f32 %v328, %v326
    %v330 = vmul.f32 %v329, %v328
    %v331 = vmul.f32 0.5, %v330
    %v332 = vsub.f32 1.5, %v331
    %v333 = vmul.f32 %v328, %v332
    %vm334 = vweird.f32 %v326
    %vm335 = vweird.f32 %v328
    %vm336 = vmor %vm334, %vm335
    %v337 = vsel %vm336, %v328, %v333
    %v338 = vrsqrt.pop %v327
    %v339 = vmul.f32 %v338, %v327
    %v340 = vmul.f32 %v339, %v338
    %v341 = vmul.f32 0.5, %v340
    %v342 = vsub.f32 1.5, %v341
    %v343 = vmul.f32 %v338, %v342
    %vm344 = vweird.f32 %v327
    %vm345 = vweird.f32 %v338
    %vm346 = vmor %vm344, %vm345
    %v347 = vsel %vm346, %v338, %v343
    %v348 = vmul.f32 %v324, %v337
    %v349 = vmul.f32 %v325, %v347
    %v350 = vld [vmem:[%s7] sm:$0x1]
    %v352 = vperm.slane %v350, 0
    %v354 = vmul.f32 %v348, %v352
    %v355 = vmul.f32 %v349, %v352
    %v356 = vld [vmem:[%s8] sm:$0x1]
    %v358 = vperm.slane %v356, 0
    %v360 = vadd.f32 %v354, %v358
    %v361 = vadd.f32 %v355, %v358
    %v362 = vmax.f32 %v360, 0.0
    %v363 = vmax.f32 %v361, 0.0
    %v364 = vadd.f32 %v362, %v173
    %v365 = vadd.f32 %v363, %v176
    %v366 = vld [vmem:[#allocation10] sm:$0xff]
    %v367 = vld [vmem:[#allocation10 + $0x8] sm:$0xff]
    %v368 = vld [vmem:[#allocation10 + $0x10] sm:$0xff]
    %v369 = vld [vmem:[#allocation10 + $0x18] sm:$0xff]
    %v370 = vld [vmem:[#allocation10 + $0x20] sm:$0xff]
    %v371 = vld [vmem:[#allocation10 + $0x28] sm:$0xff]
    %v372 = vld [vmem:[#allocation10 + $0x30] sm:$0xff]
    %v373 = vld [vmem:[#allocation10 + $0x38] sm:$0xff]
    %v374 = vld [vmem:[#allocation10 + $0x40] sm:$0xff]
    %v375 = vld [vmem:[#allocation10 + $0x48] sm:$0xff]
    %v376 = vld [vmem:[#allocation10 + $0x50] sm:$0xff]
    %v377 = vld [vmem:[#allocation10 + $0x58] sm:$0xff]
    %v378 = vld [vmem:[#allocation10 + $0x60] sm:$0xff]
    %v379 = vld [vmem:[#allocation10 + $0x68] sm:$0xff]
    %v380 = vld [vmem:[#allocation10 + $0x70] sm:$0xff]
    %v381 = vld [vmem:[#allocation10 + $0x78] sm:$0xff]
    %v382 = vld [vmem:[%s10] sm:$0x1]
    %v384 = vperm.slane %v382, 0
    %386 = vmatpush.msra.mxu0 %v381
    %387 = vmatpush.msra.mxu0 %v380
    %388 = vmatpush.msra.mxu0 %v379
    %389 = vmatpush.msra.mxu0 %v378
    %390 = vmatpush.msra.mxu0 %v377
    %391 = vmatpush.msra.mxu0 %v376
    %392 = vmatpush.msra.mxu0 %v375
    %393 = vmatpush.msra.mxu0 %v374
    %394 = vmatpush.msra.mxu0 %v373
    %395 = vmatpush.msra.mxu0 %v372
    %396 = vmatpush.msra.mxu0 %v371
    %397 = vmatpush.msra.mxu0 %v370
    %398 = vmatpush.msra.mxu0 %v369
    %399 = vmatpush.msra.mxu0 %v368
    %400 = vmatpush.msra.mxu0 %v367
    %401 = vmatpush.msra.mxu0 %v366
    %402 = vmatmul.f32.gmra.mxu0 %v364
    %v403 = vpop.f32.mrf.mxu0
    %v404 = vadd.f32 %v384, %v403
    %405 = vmatmul.f32.gmra.mxu0 %v365
    %v406 = vpop.f32.mrf.mxu0
    %v407 = vadd.f32 %v384, %v406
    %408 = vdwg.mxu0
    %v409 = vxor.u32 %v404, 2147483648
    %v410 = vxor.u32 %v407, 2147483648
    %v411 = vmul.f32 %v409, 1.442695
    %v412 = vpow.pop %v411
    %v413 = vmul.f32 %v410, 1.442695
    %v414 = vpow.pop %v413
    %v415 = vadd.f32 %v412, 1.0
    %v416 = vadd.f32 %v414, 1.0
    %v417 = vrcp.pop %v415
    %v418 = vmul.f32 %v415, %v417
    %v419 = vsub.f32 1.0, %v418
    %v420 = vmul.f32 %v417, %v419
    %v421 = vadd.f32 %v417, %v420
    %vm422 = vweird.f32 %v415
    %vm423 = vweird.f32 %v417
    %vm424 = vmor %vm422, %vm423
    %v425 = vsel %vm424, %v417, %v421
    %v426 = vand.u32 2147483647, %v415
    %vm427 = vcmp.eq.f32.partialorder %v426, 8.507059e+37
    %v428 = vand.u32 %v415, 2147483648
    %v429 = vor.u32 1.1754944e-38, %v428
    %v430 = vsel %vm427, %v429, %v425
    %v431 = vmul.f32 1.0, %v430
    %v432 = vrcp.pop %v416
    %v433 = vmul.f32 %v416, %v432
    %v434 = vsub.f32 1.0, %v433
    %v435 = vmul.f32 %v432, %v434
    %v436 = vadd.f32 %v432, %v435
    %vm437 = vweird.f32 %v416
    %vm438 = vweird.f32 %v432
    %vm439 = vmor %vm437, %vm438
    %v440 = vsel %vm439, %v432, %v436
    %v441 = vand.u32 2147483647, %v416
    %vm442 = vcmp.eq.f32.partialorder %v441, 8.507059e+37
    %v443 = vand.u32 %v416, 2147483648
    %v444 = vor.u32 1.1754944e-38, %v443
    %v445 = vsel %vm442, %v444, %v440
    %v446 = vmul.f32 1.0, %v445
    %v447 = vpack.c.bf16 %v431, %v431
    %v448 = vpack.c.bf16 %v446, %v446
    %449 = vst [vmem:[#allocation11] sm:$0xf] %v447
    %450 = vst [vmem:[#allocation11 + $0x4] sm:$0xf] %v448
    // Predicated region
    $region66: #{tpu_custom_call.1} parent=1 // pred_check
      _
    $region67: #{tpu_custom_call.1} parent=1 // pred_check_branch
      %452 = sbr.rel (0) target = $region69
    $region68: #{tpu_custom_call.1} parent=1 // pred_region
      %454 = vsyncadd [#allocation4], 0
      %s455 = sshll.u32 [#allocation11], 4
      %s456 = int_to_ptr.vmem [resolvable:$true] %s455
      %s457 = sshll.u32 %s11, 4
      %s458 = int_to_ptr.hbm [resolvable:$true] %s457
      %463 = dma.vmem_to_hbm [thread:$0]  %s456, 128, %s458, [#allocation4], 64, 64, 4
    $region69: #{tpu_custom_call.1} parent=1 // pred_fallthru
      _
    // Predicated region
    $region70: #{tpu_custom_call.1} parent=1 // pred_check
      _
    $region71: #{tpu_custom_call.1} parent=1 // pred_check_branch
      %465 = sbr.rel (0) target = $region73
    $region72: #{tpu_custom_call.1} parent=1 // pred_region
      %467 = dma.done [#allocation4], 128
    $region73: #{tpu_custom_call.1} parent=1 // pred_fallthru
      _
    %468 = vsyncpa [#allocation3], 1
    %469 = vsyncpa [#allocation6], 1
    %470 = vsyncpa [#allocation9], 1
    %471 = vsyncpa [#allocation4], 1

</llo_original>
